<compile_context>
chip_gen: v6e
topology: v6e:2x2x1
jax: 0.10.0
libtpu: 0.0.40
codegen_flags: <defaults>
</compile_context>

<pallas_src>
import functools

import jax
import jax.numpy as jnp
from jax.experimental import pallas as pl
from jax.experimental.pallas import tpu as pltpu


def _round_up(x, m):
    return (x + m - 1) // m * m


def _pad2d(a, rows, cols):
    return jnp.pad(a, ((0, rows - a.shape[0]), (0, cols - a.shape[1])))


def _fused_gcn_kernel(adj_ref, xw1_hbm, b1_ref, w2_ref, b2_ref,
                      out_ref, xw1_s, hw2_s, *, tm, out_channels):
    """Fused 2-layer GCN.

    Grid = (phase, row_tile).  adj_ref is the (tm, N_pad) row slab for this tile,
    xw1_hbm is the pre-projected X@W1 left in HBM (copied once into xw1_s),
    b1/w2/b2 are small resident operands, xw1_s / hw2_s are whole-graph VMEM scratch.
    """
    p = pl.program_id(0)
    r = pl.program_id(1)

    @pl.when(jnp.logical_and(p == 0, r == 0))
    def _():
        # One-shot DMA of the hoisted projection (X @ W1) into single-buffered scratch.
        pltpu.sync_copy(xw1_hbm, xw1_s)

    @pl.when(p == 0)
    def _():
        # Layer 1 propagate + bias + ReLU for this row tile, then project with W2 and
        # stash the (tm, C_out_pad) slab in VMEM scratch for phase 1.
        h = jnp.dot(adj_ref[...], xw1_s[...], preferred_element_type=jnp.float32)
        h = jnp.maximum(h + b1_ref[...], 0.0)
        hw2 = jnp.dot(h.astype(w2_ref.dtype), w2_ref[...],
                      preferred_element_type=jnp.float32)
        row0 = pl.multiple_of(r * tm, tm)
        hw2_s[pl.ds(row0, tm), :] = hw2.astype(hw2_s.dtype)
        # No out_ref write here: the output index_map parks phase 0 on block 0, so
        # nothing is flushed to HBM until phase 1 writes real values.

    @pl.when(p == 1)
    def _():
        # Layer 2 propagate over the full (h @ W2) scratch, bias, masked log_softmax.
        z = jnp.dot(adj_ref[...], hw2_s[...], preferred_element_type=jnp.float32)
        z = z + b2_ref[...]
        # Mask padded output columns so log_softmax normalizes over the real classes.
        col = jax.lax.broadcasted_iota(jnp.int32, z.shape, 1)
        z = jnp.where(col < out_channels, z, jnp.float32(-1e30))
        m = jnp.max(z, axis=-1, keepdims=True)
        s = z - m
        lse = jnp.log(jnp.sum(jnp.exp(s), axis=-1, keepdims=True))
        out_ref[...] = (s - lse).astype(out_ref.dtype)


@functools.partial(jax.jit, static_argnames=("tm", "compute_dtype"))
def gcn_forward(params, x, adj, *, tm=256, compute_dtype=jnp.bfloat16):
    """out = log_softmax(A @ relu(A @ X @ W1 + b1) @ W2 + b2), fused in one kernel."""
    n = adj.shape[0]
    c_out = params["w2"].shape[1]
    hidden = params["w1"].shape[1]

    n_pad = _round_up(n, tm)              # tm is a multiple of 128 -> lane-dense adj
    h_p = _round_up(hidden, 128)
    c_out_p = _round_up(c_out, 128)

    # Hoisted projection (project-then-propagate): X @ W1 done in f32 by XLA, then
    # padded + cast.  Padded rows/cols are exactly zero.
    xw1 = jnp.dot(x.astype(jnp.float32), params["w1"].astype(jnp.float32),
                  preferred_element_type=jnp.float32)
    xw1_p = _pad2d(xw1, n_pad, h_p).astype(compute_dtype)

    adj_p = _pad2d(adj.astype(compute_dtype), n_pad, n_pad)
    w2_p = _pad2d(params["w2"].astype(compute_dtype), h_p, c_out_p)
    b1_p = _pad2d(params["b1"].reshape(1, -1).astype(jnp.float32), 1, h_p)
    b2_p = _pad2d(params["b2"].reshape(1, -1).astype(jnp.float32), 1, c_out_p)

    r_tiles = n_pad // tm
    kernel = functools.partial(_fused_gcn_kernel, tm=tm, out_channels=c_out)

    # VMEM footprint (bytes): A slabs double-buffered + whole-graph scratches (single
    # buffered) + resident W2/biases (double-buffered, tiny) + output blocks.
    dt_b = jnp.dtype(compute_dtype).itemsize
    vmem_bytes = (
        2 * tm * n_pad * dt_b                  # adjacency row slabs (pipelined)
        + n_pad * h_p * dt_b                   # X@W1 scratch
        + n_pad * c_out_p * dt_b               # relu(.) @ W2 scratch
        + 2 * h_p * c_out_p * dt_b             # W2
        + 2 * 8 * (h_p + c_out_p) * 4          # biases (sublane padded)
        + 2 * tm * c_out_p * 4                 # output blocks
    )
    vmem_limit = max(32 << 20, min(int(vmem_bytes * 1.5) + (4 << 20), 100 << 20))

    out_p = pl.pallas_call(
        kernel,
        out_shape=jax.ShapeDtypeStruct((n_pad, c_out_p), jnp.float32),
        grid=(2, r_tiles),  # (phase, adjacency row tile)
        in_specs=[
            pl.BlockSpec((tm, n_pad), lambda p, r: (r, 0)),      # A row slab (streamed)
            pl.BlockSpec(memory_space=pl.ANY),                   # X@W1 (HBM, DMA'd once)
            pl.BlockSpec((1, h_p), lambda p, r: (0, 0)),         # b1
            pl.BlockSpec((h_p, c_out_p), lambda p, r: (0, 0)),   # W2
            pl.BlockSpec((1, c_out_p), lambda p, r: (0, 0)),     # b2
        ],
        # Phase 0 parks on output block 0 (never written there), phase 1 owns block r:
        # each output row tile is flushed to HBM exactly once, with real values.
        out_specs=pl.BlockSpec((tm, c_out_p), lambda p, r: (r * p, 0)),
        scratch_shapes=[
            pltpu.VMEM((n_pad, h_p), compute_dtype),      # X @ W1 (whole graph)
            pltpu.VMEM((n_pad, c_out_p), compute_dtype),  # relu(...) @ W2 (whole graph)
        ],
        compiler_params=pltpu.CompilerParams(
            # Row axis must stay "arbitrary": phase 1 reads scratch produced by every
            # phase-0 row tile, and scratch VMEM is per-TensorCore.
            dimension_semantics=("arbitrary", "arbitrary"),
            vmem_limit_bytes=vmem_limit,
        ),
    )(adj_p, xw1_p, b1_p, w2_p, b2_p)

    return out_p[:n, :c_out]


def gcn_reference(params, x, adj):
    """Pure-JAX f32 reference of the module's forward."""
    h = jnp.maximum(adj @ (x @ params["w1"]) + params["b1"], 0.0)
    z = adj @ (h @ params["w2"]) + params["b2"]
    return jax.nn.log_softmax(z, axis=-1)


def normalized_adjacency(edge_index, num_nodes):
    """Dense D^{-1/2}(A+I)D^{-1/2}; row i aggregates messages from in-neighbors j."""
    src = edge_index[0]
    dst = edge_index[1]
    a = jnp.zeros((num_nodes, num_nodes), jnp.float32)
    a = a.at[dst, src].set(1.0)                                   # edge j -> i
    a = jnp.maximum(a, jnp.eye(num_nodes, dtype=jnp.float32))     # add self loops
    deg = jnp.sum(a, axis=1)
    dinv = jnp.where(deg > 0.0, 1.0 / jnp.sqrt(deg), 0.0)
    return a * dinv[:, None] * dinv[None, :]


def init_gcn_params(key, in_channels, hidden_channels, out_channels):
    """Deterministic glorot-uniform weights + zero bias (matches GCNConv init)."""
    k1, k2 = jax.random.split(key)

    def glorot(k, fan_in, fan_out):
        limit = jnp.sqrt(6.0 / (fan_in + fan_out))
        return jax.random.uniform(
            k, (fan_in, fan_out), jnp.float32, minval=-limit, maxval=limit
        )

    return {
        "w1": glorot(k1, in_channels, hidden_channels),
        "b1": jnp.zeros((hidden_channels,), jnp.float32),
        "w2": glorot(k2, hidden_channels, out_channels),
        "b2": jnp.zeros((out_channels,), jnp.float32),
    }


if __name__ == "__main__":
    key = jax.random.PRNGKey(0)
    k_x, k_e, k_p, k_x2, k_e2 = jax.random.split(key, 5)

    # Small synthetic graph consistent with the module's forward:
    #   x: [num_nodes, in_channels], edge_index: [2, num_edges]
    num_nodes, in_channels, hidden_channels, out_channels, num_edges = 16, 8, 32, 4, 40

    x = jax.random.normal(k_x, (num_nodes, in_channels), jnp.float32)
    edge_index = jax.random.randint(k_e, (2, num_edges), 0, num_nodes, jnp.int32)
    params = init_gcn_params(k_p, in_channels, hidden_channels, out_channels)
    adj = normalized_adjacency(edge_index, num_nodes)
    ref = gcn_reference(params, x, adj)

    # 1) default bf16 path (f32 accumulation) -- relaxed tolerance vs f32 reference.
    out_bf16 = gcn_forward(params, x, adj)
    jax.block_until_ready(out_bf16)
    assert out_bf16.shape == (num_nodes, out_channels)
    assert bool(jnp.all(jnp.abs(jnp.sum(jnp.exp(out_bf16), axis=1) - 1.0) < 1e-3))
    assert float(jnp.max(jnp.abs(out_bf16 - ref))) < 1e-1

    # 2) f32 path -- tight parity with the reference.
    out_f32 = gcn_forward(params, x, adj, compute_dtype=jnp.float32)
    jax.block_until_ready(out_f32)
    assert float(jnp.max(jnp.abs(out_f32 - ref))) < 1e-4

    # 3) multi-row-tile path (exercises dynamic scratch stores / output-block parking).
    n2, e2 = 200, 600
    x2 = jax.random.normal(k_x2, (n2, in_channels), jnp.float32)
    ei2 = jax.random.randint(k_e2, (2, e2), 0, n2, jnp.int32)
    adj2 = normalized_adjacency(ei2, n2)
    ref2 = gcn_reference(params, x2, adj2)
    out2 = gcn_forward(params, x2, adj2, tm=128)
    jax.block_until_ready(out2)
    assert out2.shape == (n2, out_channels)
    assert bool(jnp.all(jnp.abs(jnp.sum(jnp.exp(out2), axis=1) - 1.0) < 1e-3))
    assert float(jnp.max(jnp.abs(out2 - ref2))) < 1.5e-1

    print("KERNEL_OK")
</pallas_src>

<mosaic_0001>
module attributes {stable_mosaic.version = 11 : i64} {
  func.func @_fused_gcn_kernel(%arg0: i32, %arg1: i32, %arg2: memref<256x256xbf16, #tpu.memory_space<vmem>>, %arg3: memref<256x128xbf16, #tpu.memory_space<any>>, %arg4: memref<1x128xf32, #tpu.memory_space<vmem>>, %arg5: memref<128x128xbf16, #tpu.memory_space<vmem>>, %arg6: memref<1x128xf32, #tpu.memory_space<vmem>>, %arg7: memref<256x128xf32, #tpu.memory_space<vmem>>, %arg8: memref<256x128xbf16, #tpu.memory_space<vmem>>, %arg9: memref<256x128xbf16, #tpu.memory_space<vmem>>) attributes {dimension_semantics = [#tpu.dimension_semantics<arbitrary>, #tpu.dimension_semantics<arbitrary>], iteration_bounds = array<i64: 2, 1>, scalar_prefetch = 0 : i64, scratch_operands = 2 : i64, tpu.core_type = #tpu.core_type<tc>, window_params = [{transform_indices = @transform_0, window_bounds = array<i64: 256, 256>}, {}, {pipeline_mode = #tpu.pipeline_mode<synchronous>, transform_indices = @transform_2, window_bounds = array<i64: 1, 128>}, {pipeline_mode = #tpu.pipeline_mode<synchronous>, transform_indices = @transform_3, window_bounds = array<i64: 128, 128>}, {pipeline_mode = #tpu.pipeline_mode<synchronous>, transform_indices = @transform_4, window_bounds = array<i64: 1, 128>}, {transform_indices = @transform_5, window_bounds = array<i64: 256, 128>}]} {
    %c0_i32 = arith.constant 0 : i32
    %0 = arith.cmpi eq, %arg0, %c0_i32 : i32
    %c0_i32_0 = arith.constant 0 : i32
    %1 = arith.cmpi eq, %arg1, %c0_i32_0 : i32
    %2 = arith.andi %0, %1 : i1
    %3 = arith.extui %2 : i1 to i32
    %c0_i32_1 = arith.constant 0 : i32
    %4 = arith.cmpi ne, %3, %c0_i32_1 : i32
    scf.if %4 {
      "tpu.region"() ({
        %11 = tpu.sem_alloc : memref<!tpu.dma_semaphore, #tpu.memory_space<semaphore_mem>>
        tpu.enqueue_dma source(%arg3 : memref<256x128xbf16, #tpu.memory_space<any>>) target(%arg8 : memref<256x128xbf16, #tpu.memory_space<vmem>>) target_semaphore(%11 : memref<!tpu.dma_semaphore, #tpu.memory_space<semaphore_mem>>)
        tpu.wait_dma2 semaphore(%11 : memref<!tpu.dma_semaphore, #tpu.memory_space<semaphore_mem>>) src(%arg3 : memref<256x128xbf16, #tpu.memory_space<any>>) dst(%arg8 : memref<256x128xbf16, #tpu.memory_space<vmem>>)
        tpu.yield
      }) : () -> ()
    } else {
    }
    %c0_i32_2 = arith.constant 0 : i32
    %5 = arith.cmpi eq, %arg0, %c0_i32_2 : i32
    %6 = arith.extui %5 : i1 to i32
    %c0_i32_3 = arith.constant 0 : i32
    %7 = arith.cmpi ne, %6, %c0_i32_3 : i32
    scf.if %7 {
      %c0 = arith.constant 0 : index
      %c0_5 = arith.constant 0 : index
      %11 = vector.load %arg2[%c0, %c0_5] : memref<256x256xbf16, #tpu.memory_space<vmem>>, vector<256x256xbf16>
      %c0_6 = arith.constant 0 : index
      %c0_7 = arith.constant 0 : index
      %12 = vector.load %arg8[%c0_6, %c0_7] : memref<256x128xbf16, #tpu.memory_space<vmem>>, vector<256x128xbf16>
      %cst = arith.constant dense<0.000000e+00> : vector<256x128xf32>
      %13 = tpu.matmul %11, %12, %cst {dimension_numbers = #tpu.dot_dimension_numbers<[1], [0], [0], [1], [0, 0, 1, 1], [], []>} : vector<256x256xbf16>, vector<256x128xbf16>, vector<256x128xf32> -> vector<256x128xf32>
      %c0_8 = arith.constant 0 : index
      %c0_9 = arith.constant 0 : index
      %14 = vector.load %arg4[%c0_8, %c0_9] : memref<1x128xf32, #tpu.memory_space<vmem>>, vector<1x128xf32>
      %15 = vector.broadcast %14 : vector<1x128xf32> to vector<256x128xf32>
      %16 = arith.addf %13, %15 : vector<256x128xf32>
      %cst_10 = arith.constant 0.000000e+00 : f32
      %17 = vector.broadcast %cst_10 : f32 to vector<256x128xf32>
      %18 = arith.maximumf %16, %17 : vector<256x128xf32>
      %19 = arith.truncf %18 : vector<256x128xf32> to vector<256x128xbf16>
      %c0_11 = arith.constant 0 : index
      %c0_12 = arith.constant 0 : index
      %20 = vector.load %arg5[%c0_11, %c0_12] : memref<128x128xbf16, #tpu.memory_space<vmem>>, vector<128x128xbf16>
      %cst_13 = arith.constant dense<0.000000e+00> : vector<256x128xf32>
      %21 = tpu.matmul %19, %20, %cst_13 {dimension_numbers = #tpu.dot_dimension_numbers<[1], [0], [0], [1], [0, 0, 1, 1], [], []>} : vector<256x128xbf16>, vector<128x128xbf16>, vector<256x128xf32> -> vector<256x128xf32>
      %c256_i32 = arith.constant 256 : i32
      %22 = arith.muli %arg1, %c256_i32 : i32
      %23 = tpu.assume_multiple %22, 256 : i32
      %24 = arith.truncf %21 : vector<256x128xf32> to vector<256x128xbf16>
      %25 = arith.index_cast %23 : i32 to index
      %c0_14 = arith.constant 0 : index
      %26 = vector.load %arg9[%25, %c0_14] : memref<256x128xbf16, #tpu.memory_space<vmem>>, vector<256x128xbf16>
      tpu.vector_store %arg9[%25, %c0_14], %24 {strides = array<i32>} : memref<256x128xbf16, #tpu.memory_space<vmem>>, vector<256x128xbf16>,
    } else {
    }
    %c1_i32 = arith.constant 1 : i32
    %8 = arith.cmpi eq, %arg0, %c1_i32 : i32
    %9 = arith.extui %8 : i1 to i32
    %c0_i32_4 = arith.constant 0 : i32
    %10 = arith.cmpi ne, %9, %c0_i32_4 : i32
    scf.if %10 {
      %c0 = arith.constant 0 : index
      %c0_5 = arith.constant 0 : index
      %11 = vector.load %arg2[%c0, %c0_5] : memref<256x256xbf16, #tpu.memory_space<vmem>>, vector<256x256xbf16>
      %c0_6 = arith.constant 0 : index
      %c0_7 = arith.constant 0 : index
      %12 = vector.load %arg9[%c0_6, %c0_7] : memref<256x128xbf16, #tpu.memory_space<vmem>>, vector<256x128xbf16>
      %cst = arith.constant dense<0.000000e+00> : vector<256x128xf32>
      %13 = tpu.matmul %11, %12, %cst {dimension_numbers = #tpu.dot_dimension_numbers<[1], [0], [0], [1], [0, 0, 1, 1], [], []>} : vector<256x256xbf16>, vector<256x128xbf16>, vector<256x128xf32> -> vector<256x128xf32>
      %c0_8 = arith.constant 0 : index
      %c0_9 = arith.constant 0 : index
      %14 = vector.load %arg6[%c0_8, %c0_9] : memref<1x128xf32, #tpu.memory_space<vmem>>, vector<1x128xf32>
      %15 = vector.broadcast %14 : vector<1x128xf32> to vector<256x128xf32>
      %16 = arith.addf %13, %15 : vector<256x128xf32>
      %17 = tpu.iota {dimensions = array<i32: 1>} : vector<256x128xi32>
      %c4_i32 = arith.constant 4 : i32
      %18 = vector.broadcast %c4_i32 : i32 to vector<256x128xi32>
      %19 = arith.cmpi slt, %17, %18 : vector<256x128xi32>
      %cst_10 = arith.constant -1.000000e+30 : f32
      %20 = vector.broadcast %cst_10 : f32 to vector<256x128xf32>
      %21 = arith.select %19, %16, %20 : vector<256x128xi1>, vector<256x128xf32>
      %cst_11 = arith.constant dense<0xFF800000> : vector<256xf32>
      %22 = vector.multi_reduction <maximumf>, %21, %cst_11 [1] : vector<256x128xf32> to vector<256xf32>
      %23 = vector.shape_cast %22 : vector<256xf32> to vector<256x1xf32>
      %24 = vector.broadcast %23 : vector<256x1xf32> to vector<256x128xf32>
      %25 = arith.subf %21, %24 : vector<256x128xf32>
      %26 = math.exp %25 : vector<256x128xf32>
      %cst_12 = arith.constant dense<0.000000e+00> : vector<256xf32>
      %27 = vector.multi_reduction <add>, %26, %cst_12 [1] : vector<256x128xf32> to vector<256xf32>
      %28 = vector.shape_cast %27 : vector<256xf32> to vector<256x1xf32>
      %29 = math.log %28 : vector<256x1xf32>
      %30 = vector.broadcast %29 : vector<256x1xf32> to vector<256x128xf32>
      %31 = arith.subf %25, %30 : vector<256x128xf32>
      %c0_13 = arith.constant 0 : index
      %c0_14 = arith.constant 0 : index
      %32 = vector.load %arg7[%c0_13, %c0_14] : memref<256x128xf32, #tpu.memory_space<vmem>>, vector<256x128xf32>
      tpu.vector_store %arg7[%c0_13, %c0_14], %31 {strides = array<i32>} : memref<256x128xf32, #tpu.memory_space<vmem>>, vector<256x128xf32>,
    } else {
    }
    return
  }
  func.func @transform_0(%arg0: i32, %arg1: i32) -> (i32, i32) {
    %c0_i32 = arith.constant 0 : i32
    %c0_i32_0 = arith.constant 0 : i32
    return %arg1, %c0_i32 : i32, i32
  }
  func.func @transform_2(%arg0: i32, %arg1: i32) -> (i32, i32) {
    %c0_i32 = arith.constant 0 : i32
    %c0_i32_0 = arith.constant 0 : i32
    %c0_i32_1 = arith.constant 0 : i32
    return %c0_i32, %c0_i32_0 : i32, i32
  }
  func.func @transform_3(%arg0: i32, %arg1: i32) -> (i32, i32) {
    %c0_i32 = arith.constant 0 : i32
    %c0_i32_0 = arith.constant 0 : i32
    %c0_i32_1 = arith.constant 0 : i32
    return %c0_i32, %c0_i32_0 : i32, i32
  }
  func.func @transform_4(%arg0: i32, %arg1: i32) -> (i32, i32) {
    %c0_i32 = arith.constant 0 : i32
    %c0_i32_0 = arith.constant 0 : i32
    %c0_i32_1 = arith.constant 0 : i32
    return %c0_i32, %c0_i32_0 : i32, i32
  }
  func.func @transform_5(%arg0: i32, %arg1: i32) -> (i32, i32) {
    %0 = arith.muli %arg1, %arg0 : i32
    %c0_i32 = arith.constant 0 : i32
    %c0_i32_0 = arith.constant 0 : i32
    return %0, %c0_i32 : i32, i32
  }
}

</mosaic_0001>

<llo_original>
// kernel: gcn_forward.1
$region0: #{gcn_forward.1}
  #allocation0 [shape = 'u32[]', space=smem, size = 0x4, offset = 0x4, fixed_abs, tag = 'smem constant byte address 0x4 - core index']
  #allocation1 [shape = 'u32[144,128]{1,0:T(1,128)}', space=vmem, size = 0x12000, scoped, tag = 'internal scratch']
  #allocation2 [shape = 'bf16[256,128]{1,0:T(8,128)(2,1)}', space=vmem, size = 0x10000, scoped, tag = 'scratch operand']
  #allocation3 [shape = 'bf16[256,128]{1,0:T(8,128)(2,1)}', space=vmem, size = 0x10000, scoped, tag = 'scratch operand']
  #allocation5 [shape = 's32[]', space=sflag, size = 0x4, offset = 0, fixed_abs, tag = 'sflag constant byte address 0x0 - dummy sync flag']
  %s0 = inlined_call_operand.vmem [shape: bf16[256,256], index: 0, kind: input, shape index: {}]
  %s1 = inlined_call_operand.vmem [shape: bf16[256,128], index: 1, kind: input, shape index: {}]
  %s2 = inlined_call_operand.vmem [shape: f32[1,128], index: 2, kind: input, shape index: {}]
  %s3 = inlined_call_operand.vmem [shape: bf16[128,128], index: 3, kind: input, shape index: {}]
  %s4 = inlined_call_operand.vmem [shape: f32[1,128], index: 4, kind: input, shape index: {}]
  %s5 = inlined_call_operand.vmem [shape: f32[256,128], index: 5, kind: output, shape index: {}]
  %s6 = sld [smem:[#allocation0]]
  $region96: #{gcn_forward.1} parent=0
    _
  %s8 = ssub.s32 1, %s6
  %s9 = scalar_select 0, %s8, %s6
  loop: start=0, step=1, limit=4
  $region2: #{gcn_forward.1} parent=0 // loop_pre_header
    _
  $region3: #{gcn_forward.1} parent=0 // loop_header
    %s11 = sphi 0, %s15
    %p12 = scmp.ge.s32.totalorder %s11, 4
    %s18 = sphi 0, %s30
    %s19 = sphi 0, %s26
    %s20 = sphi 0, %s18
    %s21 = sphi 0, %s19
    %s22 = sphi 0, %s20
    %s23 = sphi 0, %s21
    %s33 = sphi 0, %s35
    %s36 = sphi 0, %s33
    %s37 = sphi 0, %s36
    %s53 = sphi 0, %s37
    %s57 = sphi 0, %s57
    %s59 = sphi 0, %s57
    %s60 = sphi 0, %s59
    %s74 = sphi 0, %s60
    %s78 = sphi 0, %s78
    %s80 = sphi 0, %s78
    %s81 = sphi 0, %s80
    %s95 = sphi 0, %s81
    %s99 = sphi 0, %s99
    %s101 = sphi 0, %s99
    %s102 = sphi 0, %s101
    %s116 = sphi 0, %s102
    %s124 = sphi 0, %s126
    %s127 = sphi 0, %s124
    %s128 = sphi 0, %s127
    %s144 = sphi 0, %s128
  $region4: #{gcn_forward.1} parent=0 // loop_header_branch
    %14 = sbr.rel (%p12) target = $region8
  $region5: #{gcn_forward.1} parent=0 // loop_body
    %s16 = ssub.s32 %s11, 1
    %s17 = ssub.s32 %s11, 2
    %s24 = sadd.s32 1, %s19
    %p25 = scmp.ge.s32.totalorder %s24, 1
    %s26 = scalar_select %p25, 0, %s24
    %s27 = sadd.s32 1, %s18
    %s28 = scalar_select %p25, %s27, %s18
    %p29 = scmp.ge.s32.totalorder %s28, 2
    %s30 = scalar_select %p29, 0, %s28
    %s31 = ssub.s32 %s19, %s26
    %p32 = scmp.eq.s32.totalorder %s31, 0
    %s34 = sadd.s32 %s33, 1
    %s35 = scalar_select %p32, %s33, %s34
    %p38 = pneg %p32
    %p39 = scmp.eq.s32.totalorder %s11, 1
    %p40 = por %p38, %p39
    %p41 = scmp.ne.s32.totalorder %s33, %s36
    %p42 = scmp.eq.s32.totalorder %s11, 0
    %p43 = por %p41, %p42
    %p44 = scmp.ne.s32.totalorder %s33, %s36
    %p45 = scmp.eq.s32.totalorder %s16, 1
    %p46 = por %p44, %p45
    %p47 = scmp.ne.s32.totalorder %s36, %s37
    %p48 = scmp.eq.s32.totalorder %s16, 0
    %p49 = por %p47, %p48
    %p50 = scmp.ne.s32.totalorder %s36, %s37
    %p51 = scmp.eq.s32.totalorder %s17, 1
    %p52 = por %p50, %p51
    %p54 = scmp.ne.s32.totalorder %s37, %s53
    %p55 = scmp.eq.s32.totalorder %s17, 0
    %p56 = por %p54, %p55
    %s58 = sadd.s32 %s57, 1
    %p61 = scmp.eq.s32.totalorder %s11, 1
    %p62 = scmp.ne.s32.totalorder %s57, %s59
    %p63 = scmp.eq.s32.totalorder %s11, 0
    %p64 = por %p62, %p63
    %p65 = scmp.ne.s32.totalorder %s57, %s59
    %p66 = scmp.eq.s32.totalorder %s16, 1
    %p67 = por %p65, %p66
    %p68 = scmp.ne.s32.totalorder %s59, %s60
    %p69 = scmp.eq.s32.totalorder %s16, 0
    %p70 = por %p68, %p69
    %p71 = scmp.ne.s32.totalorder %s59, %s60
    %p72 = scmp.eq.s32.totalorder %s17, 1
    %p73 = por %p71, %p72
    %p75 = scmp.ne.s32.totalorder %s60, %s74
    %p76 = scmp.eq.s32.totalorder %s17, 0
    %p77 = por %p75, %p76
    %s79 = sadd.s32 %s78, 1
    %p82 = scmp.eq.s32.totalorder %s11, 1
    %p83 = scmp.ne.s32.totalorder %s78, %s80
    %p84 = scmp.eq.s32.totalorder %s11, 0
    %p85 = por %p83, %p84
    %p86 = scmp.ne.s32.totalorder %s78, %s80
    %p87 = scmp.eq.s32.totalorder %s16, 1
    %p88 = por %p86, %p87
    %p89 = scmp.ne.s32.totalorder %s80, %s81
    %p90 = scmp.eq.s32.totalorder %s16, 0
    %p91 = por %p89, %p90
    %p92 = scmp.ne.s32.totalorder %s80, %s81
    %p93 = scmp.eq.s32.totalorder %s17, 1
    %p94 = por %p92, %p93
    %p96 = scmp.ne.s32.totalorder %s81, %s95
    %p97 = scmp.eq.s32.totalorder %s17, 0
    %p98 = por %p96, %p97
    %s100 = sadd.s32 %s99, 1
    %p103 = scmp.eq.s32.totalorder %s11, 1
    %p104 = scmp.ne.s32.totalorder %s99, %s101
    %p105 = scmp.eq.s32.totalorder %s11, 0
    %p106 = por %p104, %p105
    %p107 = scmp.ne.s32.totalorder %s99, %s101
    %p108 = scmp.eq.s32.totalorder %s16, 1
    %p109 = por %p107, %p108
    %p110 = scmp.ne.s32.totalorder %s101, %s102
    %p111 = scmp.eq.s32.totalorder %s16, 0
    %p112 = por %p110, %p111
    %p113 = scmp.ne.s32.totalorder %s101, %s102
    %p114 = scmp.eq.s32.totalorder %s17, 1
    %p115 = por %p113, %p114
    %p117 = scmp.ne.s32.totalorder %s102, %s116
    %p118 = scmp.eq.s32.totalorder %s17, 0
    %p119 = por %p117, %p118
    %s120 = smul.u32 %s19, %s18
    %s121 = smul.u32 %s26, %s30
    %s122 = ssub.s32 %s120, %s121
    %p123 = scmp.eq.s32.totalorder %s122, 0
    %s125 = sadd.s32 %s124, 1
    %s126 = scalar_select %p123, %s124, %s125
    %p129 = pneg %p123
    %p130 = scmp.eq.s32.totalorder %s11, 1
    %p131 = por %p129, %p130
    %p132 = scmp.ne.s32.totalorder %s124, %s127
    %p133 = scmp.eq.s32.totalorder %s11, 0
    %p134 = por %p132, %p133
    %p135 = scmp.ne.s32.totalorder %s124, %s127
    %p136 = scmp.eq.s32.totalorder %s16, 1
    %p137 = por %p135, %p136
    %p138 = scmp.ne.s32.totalorder %s127, %s128
    %p139 = scmp.eq.s32.totalorder %s16, 0
    %p140 = por %p138, %p139
    %p141 = scmp.ne.s32.totalorder %s127, %s128
    %p142 = scmp.eq.s32.totalorder %s17, 1
    %p143 = por %p141, %p142
    %p145 = scmp.ne.s32.totalorder %s128, %s144
    %p146 = scmp.eq.s32.totalorder %s17, 0
    %p147 = por %p145, %p146
    %p148 = scmp.le.s32.totalorder 1, %s11
    %p149 = scmp.lt.s32.totalorder %s11, 3
    %p150 = pnand %p148, %p149
    %p151 = pneg %p150
    // Predicated region
    $region9: #{gcn_forward.1} parent=5 // pred_check
      _
    $region10: #{gcn_forward.1} parent=5 // pred_check_branch
      %153 = sbr.rel (%p150) target = $region12
    $region11: #{gcn_forward.1} parent=5 // pred_region
      %s154 = ssub.s32 %s11, 1
      // Predicated region
      $region13: #{gcn_forward.1} parent=11 // pred_check
        %p155 = pneg %p49
      $region14: #{gcn_forward.1} parent=11 // pred_check_branch
        %157 = sbr.rel (%p155) target = $region16
      $region15: #{gcn_forward.1} parent=11 // pred_region
        %s158 = smul.u32 32, %s21
        %p159 = scmp.lt.s32.totalorder %s158, 31
        %s160 = scalar_select %p159, %s158, 31
        %s161 = smul.addr %s160, 2
        %s162 = smul.addr %s161, 4
        %s163 = scalar_lea.vmem %s0, %s162
        %s164 = smul.u32 32, %s21
      $region16: #{gcn_forward.1} parent=11 // pred_fallthru
        _
      // Predicated region
      $region17: #{gcn_forward.1} parent=11 // pred_check
        %p165 = pneg %p70
      $region18: #{gcn_forward.1} parent=11 // pred_check_branch
        %167 = sbr.rel (%p165) target = $region20
      $region19: #{gcn_forward.1} parent=11 // pred_region
        _
      $region20: #{gcn_forward.1} parent=11 // pred_fallthru
        _
      // Predicated region
      $region21: #{gcn_forward.1} parent=11 // pred_check
        %p168 = pneg %p91
      $region22: #{gcn_forward.1} parent=11 // pred_check_branch
        %170 = sbr.rel (%p168) target = $region24
      $region23: #{gcn_forward.1} parent=11 // pred_region
        _
      $region24: #{gcn_forward.1} parent=11 // pred_fallthru
        _
      // Predicated region
      $region25: #{gcn_forward.1} parent=11 // pred_check
        %p171 = pneg %p112
      $region26: #{gcn_forward.1} parent=11 // pred_check_branch
        %173 = sbr.rel (%p171) target = $region28
      $region27: #{gcn_forward.1} parent=11 // pred_region
        _
      $region28: #{gcn_forward.1} parent=11 // pred_fallthru
        _
    $region12: #{gcn_forward.1} parent=5 // pred_fallthru
      _
    %p174 = scmp.lt.s32.totalorder %s11, 2
    // Predicated region
    $region29: #{gcn_forward.1} parent=5 // pred_check
      %p175 = pneg %p174
    $region30: #{gcn_forward.1} parent=5 // pred_check_branch
      %177 = sbr.rel (%p175) target = $region32
    $region31: #{gcn_forward.1} parent=5 // pred_region
      _
    $region32: #{gcn_forward.1} parent=5 // pred_fallthru
      _
    %p178 = scmp.le.s32.totalorder 1, %s11
    %p179 = scmp.lt.s32.totalorder %s11, 3
    %p180 = pnand %p178, %p179
    %p181 = pneg %p180
    // Predicated region
    $region33: #{gcn_forward.1} parent=5 // pred_check
      _
    $region34: #{gcn_forward.1} parent=5 // pred_check_branch
      %183 = sbr.rel (%p180) target = $region36
    $region35: #{gcn_forward.1} parent=5 // pred_region
      %s184 = ssub.s32 %s11, 1
      %s185 = smul.u32 32, %s21
      %p186 = scmp.lt.s32.totalorder %s185, 31
      %s187 = scalar_select %p186, %s185, 31
      %s188 = smul.addr %s187, 2
      %s189 = smul.addr %s188, 4
      %s190 = scalar_lea.vmem %s0, %s189
      %p191 = pneg %p49
      %p192 = pneg %p46
      %p193 = pneg %p70
      %p194 = pneg %p67
      %p195 = pneg %p91
      %p196 = pneg %p88
      %p197 = pneg %p112
      %p198 = pneg %p109
      %p199 = pneg %p140
      %p200 = pneg %p137
      %s201 = smul.u32 %s21, %s20
      %s202 = smul.u32 32, %s201
      %p203 = scmp.lt.s32.totalorder %s202, 31
      %s204 = scalar_select %p203, %s202, 31
      %s205 = smul.addr %s204, 8
      %s206 = scalar_lea.vmem %s5, %s205
      %s207 = smul.u32 32, %s21
      %p208 = scmp.lt.s32.totalorder %s207, 31
      %s209 = scalar_select %p208, %s207, 31
      %s210 = smul.addr %s209, 2
      %s211 = smul.addr %s210, 4
      %s212 = scalar_lea.vmem %s0, %s211
      %s213 = smul.u32 32, %s21
      %s214 = smul.u32 %s21, %s20
      %s215 = smul.u32 32, %s214
      %p216 = scmp.lt.s32.totalorder %s215, 31
      %s217 = scalar_select %p216, %s215, 31
      %s218 = smul.addr %s217, 8
      %s219 = scalar_lea.vmem %s5, %s218
      %s220 = smul.u32 %s21, %s20
      %s221 = smul.u32 32, %s220
      %p223 = scmp.eq.s32.totalorder %s20, 0
      %p224 = scmp.eq.s32.totalorder %s21, 0
      %p225 = pnand %p223, %p224
      %p226 = pneg %p225
      // Predicated region
      $region37: #{gcn_forward.1} parent=35 // pred_check
        _
      $region38: #{gcn_forward.1} parent=35 // pred_check_branch
        %228 = sbr.rel (%p225) target = $region40
      $region39: #{gcn_forward.1} parent=35 // pred_region
        $region41: #{gcn_forward.1} parent=39
          #allocation4 [shape = 's32[1]{0}', space=sflag, size = 0x4, scoped, tag = 'scoped memory for gcn_forward.1']
          %p230 = scmp.lt.u32.totalorder 128, 8
          %p231 = pneg %p230
          // Predicated region
          $region42: #{gcn_forward.1} parent=41 // pred_check
            _
          $region43: #{gcn_forward.1} parent=41 // pred_check_branch
            %233 = sbr.rel (%p230) target = $region45
          $region44: #{gcn_forward.1} parent=41 // pred_region
            %s249 = sand.u32 128, 7
            %p250 = scmp.eq.s32.totalorder %s249, 0
            // Predicated region
            $region57: #{gcn_forward.1} parent=44 // pred_check
              %p251 = pneg %p250
            $region58: #{gcn_forward.1} parent=44 // pred_check_branch
              %253 = sbr.rel (%p251) target = $region60
            $region59: #{gcn_forward.1} parent=44 // pred_region
              loop: start=0, step=1, limit=1
              $region61: #{gcn_forward.1} parent=59 // loop_pre_header
                _
              $region62: #{gcn_forward.1} parent=59 // loop_header
                %s255 = sphi 0, %s259
                %p256 = scmp.ge.s32.totalorder %s255, 1
                %s260 = sphi %s1, %s1
                %s261 = sphi [#allocation2], [#allocation2]
              $region63: #{gcn_forward.1} parent=59 // loop_header_branch
                %258 = sbr.rel (%p256) target = $region67
              $region64: #{gcn_forward.1} parent=59 // loop_body
                %v262 = vld [vmem:[%s260] sm:$0xff]
                %263 = vst [vmem:[%s261] sm:$0xff] %v262
                %v264 = vld [vmem:[%s260 + $0x8] sm:$0xff]
                %265 = vst [vmem:[%s261 + $0x8] sm:$0xff] %v264
                %v266 = vld [vmem:[%s260 + $0x10] sm:$0xff]
                %267 = vst [vmem:[%s261 + $0x10] sm:$0xff] %v266
                %v268 = vld [vmem:[%s260 + $0x18] sm:$0xff]
                %269 = vst [vmem:[%s261 + $0x18] sm:$0xff] %v268
                %v270 = vld [vmem:[%s260 + $0x20] sm:$0xff]
                %271 = vst [vmem:[%s261 + $0x20] sm:$0xff] %v270
                %v272 = vld [vmem:[%s260 + $0x28] sm:$0xff]
                %273 = vst [vmem:[%s261 + $0x28] sm:$0xff] %v272
                %v274 = vld [vmem:[%s260 + $0x30] sm:$0xff]
                %275 = vst [vmem:[%s261 + $0x30] sm:$0xff] %v274
                %v276 = vld [vmem:[%s260 + $0x38] sm:$0xff]
                %277 = vst [vmem:[%s261 + $0x38] sm:$0xff] %v276
                %v278 = vld [vmem:[%s260 + $0x40] sm:$0xff]
                %279 = vst [vmem:[%s261 + $0x40] sm:$0xff] %v278
                %v280 = vld [vmem:[%s260 + $0x48] sm:$0xff]
                %281 = vst [vmem:[%s261 + $0x48] sm:$0xff] %v280
                %v282 = vld [vmem:[%s260 + $0x50] sm:$0xff]
                %283 = vst [vmem:[%s261 + $0x50] sm:$0xff] %v282
                %v284 = vld [vmem:[%s260 + $0x58] sm:$0xff]
                %285 = vst [vmem:[%s261 + $0x58] sm:$0xff] %v284
                %v286 = vld [vmem:[%s260 + $0x60] sm:$0xff]
                %287 = vst [vmem:[%s261 + $0x60] sm:$0xff] %v286
                %v288 = vld [vmem:[%s260 + $0x68] sm:$0xff]
                %289 = vst [vmem:[%s261 + $0x68] sm:$0xff] %v288
                %v290 = vld [vmem:[%s260 + $0x70] sm:$0xff]
                %291 = vst [vmem:[%s261 + $0x70] sm:$0xff] %v290
                %v292 = vld [vmem:[%s260 + $0x78] sm:$0xff]
                %293 = vst [vmem:[%s261 + $0x78] sm:$0xff] %v292
              $region65: #{gcn_forward.1} parent=59 // loop_footer
                %s259 = sadd.s32 1, %s255
              $region66: #{gcn_forward.1} parent=59 // loop_footer_branch
                %254 = sbr.rel target = $region62
              $region67: #{gcn_forward.1} parent=59 // loop_exit
                _
            $region60: #{gcn_forward.1} parent=44 // pred_fallthru
              _
            %p294 = pneg %p250
            // Predicated region
            $region68: #{gcn_forward.1} parent=44 // pred_check
              _
            $region69: #{gcn_forward.1} parent=44 // pred_check_branch
              %296 = sbr.rel (%p250) target = $region71
            $region70: #{gcn_forward.1} parent=44 // pred_region
              %s297 = sand.u32 128, 7
            $region71: #{gcn_forward.1} parent=44 // pred_fallthru
              _
          $region45: #{gcn_forward.1} parent=41 // pred_fallthru
            _
          // Predicated region
          $region46: #{gcn_forward.1} parent=41 // pred_check
            %p234 = pneg %p230
          $region47: #{gcn_forward.1} parent=41 // pred_check_branch
            %236 = sbr.rel (%p234) target = $region49
          $region48: #{gcn_forward.1} parent=41 // pred_region
            %s237 = sshll.u32 1, 128
            %s238 = ssub.s32 %s237, 1
            loop: start=0, step=1, limit=1
            $region50: #{gcn_forward.1} parent=48 // loop_pre_header
              _
            $region51: #{gcn_forward.1} parent=48 // loop_header
              %s240 = sphi 0, %s244
              %p241 = scmp.ge.s32.totalorder %s240, 1
              %s245 = sphi %s1, %s1
              %s246 = sphi [#allocation2], [#allocation2]
            $region52: #{gcn_forward.1} parent=48 // loop_header_branch
              %243 = sbr.rel (%p241) target = $region56
            $region53: #{gcn_forward.1} parent=48 // loop_body
              %v247 = vld [vmem:[%s245] sm:%s238]
              %248 = vst [vmem:[%s246] sm:%s238] %v247
            $region54: #{gcn_forward.1} parent=48 // loop_footer
              %s244 = sadd.s32 1, %s240
            $region55: #{gcn_forward.1} parent=48 // loop_footer_branch
              %239 = sbr.rel target = $region51
            $region56: #{gcn_forward.1} parent=48 // loop_exit
              _
          $region49: #{gcn_forward.1} parent=41 // pred_fallthru
            _
          // Predicated region
          $region72: #{gcn_forward.1} parent=41 // pred_check
            _
          $region73: #{gcn_forward.1} parent=41 // pred_check_branch
            %300 = sbr.rel (0) target = $region75
          $region74: #{gcn_forward.1} parent=41 // pred_region
            %301 = vsyncadd [#allocation4], 2048
          $region75: #{gcn_forward.1} parent=41 // pred_fallthru
            _
          %s302 = smul.u32 4, 32
          %s303 = smul.u32 %s302, 1
          %s304 = sshll.u32 %s303, 4
          %305 = dma.done [#allocation4], %s304
      $region40: #{gcn_forward.1} parent=35 // pred_fallthru
        _
      // Predicated region
      $region76: #{gcn_forward.1} parent=35 // pred_check
        %p306 = pneg %p223
      $region77: #{gcn_forward.1} parent=35 // pred_check_branch
        %308 = sbr.rel (%p306) target = $region79
      $region78: #{gcn_forward.1} parent=35 // pred_region
        %v309 = vld [vmem:[%s212] sm:$0xff]
        %v310 = vld [vmem:[%s212 + $0x8] sm:$0xff]
        %v311 = vld [vmem:[%s212 + $0x10] sm:$0xff]
        %v312 = vld [vmem:[%s212 + $0x18] sm:$0xff]
        %v313 = vld [vmem:[%s212 + $0x20] sm:$0xff]
        %v314 = vld [vmem:[%s212 + $0x28] sm:$0xff]
        %v315 = vld [vmem:[%s212 + $0x30] sm:$0xff]
        %v316 = vld [vmem:[%s212 + $0x38] sm:$0xff]
        %v317 = vld [vmem:[%s212 + $0x40] sm:$0xff]
        %v318 = vld [vmem:[%s212 + $0x48] sm:$0xff]
        %v319 = vld [vmem:[%s212 + $0x50] sm:$0xff]
        %v320 = vld [vmem:[%s212 + $0x58] sm:$0xff]
        %v321 = vld [vmem:[%s212 + $0x60] sm:$0xff]
        %v322 = vld [vmem:[%s212 + $0x68] sm:$0xff]
        %v323 = vld [vmem:[%s212 + $0x70] sm:$0xff]
        %v324 = vld [vmem:[%s212 + $0x78] sm:$0xff]
        %v325 = vld [vmem:[%s212 + $0x80] sm:$0xff]
        %v326 = vld [vmem:[%s212 + $0x88] sm:$0xff]
        %v327 = vld [vmem:[%s212 + $0x90] sm:$0xff]
        %v328 = vld [vmem:[%s212 + $0x98] sm:$0xff]
        %v329 = vld [vmem:[%s212 + $0xa0] sm:$0xff]
        %v330 = vld [vmem:[%s212 + $0xa8] sm:$0xff]
        %v331 = vld [vmem:[%s212 + $0xb0] sm:$0xff]
        %v332 = vld [vmem:[%s212 + $0xb8] sm:$0xff]
        %v333 = vld [vmem:[%s212 + $0xc0] sm:$0xff]
        %v334 = vld [vmem:[%s212 + $0xc8] sm:$0xff]
        %v335 = vld [vmem:[%s212 + $0xd0] sm:$0xff]
        %v336 = vld [vmem:[%s212 + $0xd8] sm:$0xff]
        %v337 = vld [vmem:[%s212 + $0xe0] sm:$0xff]
        %v338 = vld [vmem:[%s212 + $0xe8] sm:$0xff]
        %v339 = vld [vmem:[%s212 + $0xf0] sm:$0xff]
        %v340 = vld [vmem:[%s212 + $0xf8] sm:$0xff]
        %v341 = vld [vmem:[#allocation2] sm:$0xf]
        %v342 = vld [vmem:[#allocation2 + $0x4] sm:$0xf]
        %v343 = vld [vmem:[#allocation2 + $0x8] sm:$0xf]
        %v344 = vld [vmem:[#allocation2 + $0xc] sm:$0xf]
        %v345 = vld [vmem:[#allocation2 + $0x10] sm:$0xf]
        %v346 = vld [vmem:[#allocation2 + $0x14] sm:$0xf]
        %v347 = vld [vmem:[#allocation2 + $0x18] sm:$0xf]
        %v348 = vld [vmem:[#allocation2 + $0x1c] sm:$0xf]
        %v349 = vld [vmem:[#allocation2 + $0x20] sm:$0xf]
        %v350 = vld [vmem:[#allocation2 + $0x24] sm:$0xf]
        %v351 = vld [vmem:[#allocation2 + $0x28] sm:$0xf]
        %v352 = vld [vmem:[#allocation2 + $0x2c] sm:$0xf]
        %v353 = vld [vmem:[#allocation2 + $0x30] sm:$0xf]
        %v354 = vld [vmem:[#allocation2 + $0x34] sm:$0xf]
        %v355 = vld [vmem:[#allocation2 + $0x38] sm:$0xf]
        %v356 = vld [vmem:[#allocation2 + $0x3c] sm:$0xf]
        %v357 = vld [vmem:[#allocation2 + $0x40] sm:$0xf]
        %v358 = vld [vmem:[#allocation2 + $0x44] sm:$0xf]
        %v359 = vld [vmem:[#allocation2 + $0x48] sm:$0xf]
        %v360 = vld [vmem:[#allocation2 + $0x4c] sm:$0xf]
        %v361 = vld [vmem:[#allocation2 + $0x50] sm:$0xf]
        %v362 = vld [vmem:[#allocation2 + $0x54] sm:$0xf]
        %v363 = vld [vmem:[#allocation2 + $0x58] sm:$0xf]
        %v364 = vld [vmem:[#allocation2 + $0x5c] sm:$0xf]
        %v365 = vld [vmem:[#allocation2 + $0x60] sm:$0xf]
        %v366 = vld [vmem:[#allocation2 + $0x64] sm:$0xf]
        %v367 = vld [vmem:[#allocation2 + $0x68] sm:$0xf]
        %v368 = vld [vmem:[#allocation2 + $0x6c] sm:$0xf]
        %v369 = vld [vmem:[#allocation2 + $0x70] sm:$0xf]
        %v370 = vld [vmem:[#allocation2 + $0x74] sm:$0xf]
        %v371 = vld [vmem:[#allocation2 + $0x78] sm:$0xf]
        %v372 = vld [vmem:[#allocation2 + $0x7c] sm:$0xf]
        %v373 = vld [vmem:[%s2] sm:$0x1]
        %v375 = vlaneseq
        %v376 = vshrl.u32 %v375, 7
        %v377 = vsub.s32 0, %v376
        %v378 = vrot.slane %v373, %v377
        %v412 = vunpack.c.l.b16 %v309
        %v413 = vunpack.c.h.b16 %v309
        %v414 = vunpack.c.l.b16 %v310
        %v415 = vunpack.c.h.b16 %v310
        %v416 = vunpack.c.l.b16 %v311
        %v417 = vunpack.c.h.b16 %v311
        %v418 = vunpack.c.l.b16 %v312
        %v419 = vunpack.c.h.b16 %v312
        %v420 = vunpack.c.l.b16 %v313
        %v421 = vunpack.c.h.b16 %v313
        %v422 = vunpack.c.l.b16 %v314
        %v423 = vunpack.c.h.b16 %v314
        %v424 = vunpack.c.l.b16 %v315
        %v425 = vunpack.c.h.b16 %v315
        %v426 = vunpack.c.l.b16 %v316
        %v427 = vunpack.c.h.b16 %v316
        %v428 = vunpack.c.l.b16 %v317
        %v429 = vunpack.c.h.b16 %v317
        %v430 = vunpack.c.l.b16 %v318
        %v431 = vunpack.c.h.b16 %v318
        %v432 = vunpack.c.l.b16 %v319
        %v433 = vunpack.c.h.b16 %v319
        %v434 = vunpack.c.l.b16 %v320
        %v435 = vunpack.c.h.b16 %v320
        %v436 = vunpack.c.l.b16 %v321
        %v437 = vunpack.c.h.b16 %v321
        %v438 = vunpack.c.l.b16 %v322
        %v439 = vunpack.c.h.b16 %v322
        %v440 = vunpack.c.l.b16 %v323
        %v441 = vunpack.c.h.b16 %v323
        %v442 = vunpack.c.l.b16 %v324
        %v443 = vunpack.c.h.b16 %v324
        %v444 = vunpack.c.l.b16 %v325
        %v445 = vunpack.c.h.b16 %v325
        %v446 = vunpack.c.l.b16 %v326
        %v447 = vunpack.c.h.b16 %v326
        %v448 = vunpack.c.l.b16 %v327
        %v449 = vunpack.c.h.b16 %v327
        %v450 = vunpack.c.l.b16 %v328
        %v451 = vunpack.c.h.b16 %v328
        %v452 = vunpack.c.l.b16 %v329
        %v453 = vunpack.c.h.b16 %v329
        %v454 = vunpack.c.l.b16 %v330
        %v455 = vunpack.c.h.b16 %v330
        %v456 = vunpack.c.l.b16 %v331
        %v457 = vunpack.c.h.b16 %v331
        %v458 = vunpack.c.l.b16 %v332
        %v459 = vunpack.c.h.b16 %v332
        %v460 = vunpack.c.l.b16 %v333
        %v461 = vunpack.c.h.b16 %v333
        %v462 = vunpack.c.l.b16 %v334
        %v463 = vunpack.c.h.b16 %v334
        %v464 = vunpack.c.l.b16 %v335
        %v465 = vunpack.c.h.b16 %v335
        %v466 = vunpack.c.l.b16 %v336
        %v467 = vunpack.c.h.b16 %v336
        %v468 = vunpack.c.l.b16 %v337
        %v469 = vunpack.c.h.b16 %v337
        %v470 = vunpack.c.l.b16 %v338
        %v471 = vunpack.c.h.b16 %v338
        %v472 = vunpack.c.l.b16 %v339
        %v473 = vunpack.c.h.b16 %v339
        %v474 = vunpack.c.l.b16 %v340
        %v475 = vunpack.c.h.b16 %v340
        %v476 = vpack.c.b16 %v414, %v412
        %v477 = vpack.c.b16 %v415, %v413
        %v478 = vpack.c.b16 %v418, %v416
        %v479 = vpack.c.b16 %v419, %v417
        %v480 = vpack.c.b16 %v422, %v420
        %v481 = vpack.c.b16 %v423, %v421
        %v482 = vpack.c.b16 %v426, %v424
        %v483 = vpack.c.b16 %v427, %v425
        %v484 = vpack.c.b16 %v430, %v428
        %v485 = vpack.c.b16 %v431, %v429
        %v486 = vpack.c.b16 %v434, %v432
        %v487 = vpack.c.b16 %v435, %v433
        %v488 = vpack.c.b16 %v438, %v436
        %v489 = vpack.c.b16 %v439, %v437
        %v490 = vpack.c.b16 %v442, %v440
        %v491 = vpack.c.b16 %v443, %v441
        %v492 = vpack.c.b16 %v446, %v444
        %v493 = vpack.c.b16 %v447, %v445
        %v494 = vpack.c.b16 %v450, %v448
        %v495 = vpack.c.b16 %v451, %v449
        %v496 = vpack.c.b16 %v454, %v452
        %v497 = vpack.c.b16 %v455, %v453
        %v498 = vpack.c.b16 %v458, %v456
        %v499 = vpack.c.b16 %v459, %v457
        %v500 = vpack.c.b16 %v462, %v460
        %v501 = vpack.c.b16 %v463, %v461
        %v502 = vpack.c.b16 %v466, %v464
        %v503 = vpack.c.b16 %v467, %v465
        %v504 = vpack.c.b16 %v470, %v468
        %v505 = vpack.c.b16 %v471, %v469
        %v506 = vpack.c.b16 %v474, %v472
        %v507 = vpack.c.b16 %v475, %v473
        %v572 = vunpack.c.l.b16 %v341
        %v573 = vunpack.c.l.b16 %v342
        %v574 = vunpack.c.l.b16 %v343
        %v575 = vunpack.c.l.b16 %v344
        %v576 = vunpack.c.l.b16 %v345
        %v577 = vunpack.c.l.b16 %v346
        %v578 = vunpack.c.l.b16 %v347
        %v579 = vunpack.c.l.b16 %v348
        %v580 = vunpack.c.l.b16 %v349
        %v581 = vunpack.c.l.b16 %v350
        %v582 = vunpack.c.l.b16 %v351
        %v583 = vunpack.c.l.b16 %v352
        %v584 = vunpack.c.l.b16 %v353
        %v585 = vunpack.c.l.b16 %v354
        %v586 = vunpack.c.l.b16 %v355
        %v587 = vunpack.c.l.b16 %v356
        %v588 = vunpack.c.l.b16 %v357
        %v589 = vunpack.c.l.b16 %v358
        %v590 = vunpack.c.l.b16 %v359
        %v591 = vunpack.c.l.b16 %v360
        %v592 = vunpack.c.l.b16 %v361
        %v593 = vunpack.c.l.b16 %v362
        %v594 = vunpack.c.l.b16 %v363
        %v595 = vunpack.c.l.b16 %v364
        %v596 = vunpack.c.l.b16 %v365
        %v597 = vunpack.c.l.b16 %v366
        %v598 = vunpack.c.l.b16 %v367
        %v599 = vunpack.c.l.b16 %v368
        %v600 = vunpack.c.l.b16 %v369
        %v601 = vunpack.c.l.b16 %v370
        %v602 = vunpack.c.l.b16 %v371
        %v603 = vunpack.c.l.b16 %v372
        %v604 = vpack.c.b16 %v573, %v572
        %v605 = vpack.c.b16 %v575, %v574
        %v606 = vpack.c.b16 %v577, %v576
        %v607 = vpack.c.b16 %v579, %v578
        %v608 = vpack.c.b16 %v581, %v580
        %v609 = vpack.c.b16 %v583, %v582
        %v610 = vpack.c.b16 %v585, %v584
        %v611 = vpack.c.b16 %v587, %v586
        %v612 = vpack.c.b16 %v589, %v588
        %v613 = vpack.c.b16 %v591, %v590
        %v614 = vpack.c.b16 %v593, %v592
        %v615 = vpack.c.b16 %v595, %v594
        %v616 = vpack.c.b16 %v597, %v596
        %v617 = vpack.c.b16 %v599, %v598
        %v618 = vpack.c.b16 %v601, %v600
        %v619 = vpack.c.b16 %v603, %v602
        %636 = vmatprep.subr.bf16.mxu0 0
        %637 = vmatpush1.bf16.msra.mxu0 %v611
        %638 = vmatprep.subr.bf16.mxu0 0
        %639 = vmatpush1.bf16.msra.mxu0 %v610
        %640 = vmatprep.subr.bf16.mxu0 0
        %641 = vmatpush1.bf16.msra.mxu0 %v609
        %642 = vmatprep.subr.bf16.mxu0 0
        %643 = vmatpush1.bf16.msra.mxu0 %v608
        %644 = vmatprep.subr.bf16.mxu0 0
        %645 = vmatpush1.bf16.msra.mxu0 %v607
        %646 = vmatprep.subr.bf16.mxu0 0
        %647 = vmatpush1.bf16.msra.mxu0 %v606
        %648 = vmatprep.subr.bf16.mxu0 0
        %649 = vmatpush1.bf16.msra.mxu0 %v605
        %650 = vmatprep.subr.bf16.mxu0 0
        %651 = vmatpush1.bf16.msra.mxu0 %v604
        %652 = vmatprep.subr.bf16.mxu0 0
        %653 = vmatpush2.bf16.msra.mxu0 %v619
        %654 = vmatprep.subr.bf16.mxu0 0
        %655 = vmatpush2.bf16.msra.mxu0 %v618
        %656 = vmatprep.subr.bf16.mxu0 0
        %657 = vmatpush2.bf16.msra.mxu0 %v617
        %658 = vmatprep.subr.bf16.mxu0 0
        %659 = vmatpush2.bf16.msra.mxu0 %v616
        %660 = vmatprep.subr.bf16.mxu0 0
        %661 = vmatpush2.bf16.msra.mxu0 %v615
        %662 = vmatprep.subr.bf16.mxu0 0
        %663 = vmatpush2.bf16.msra.mxu0 %v614
        %664 = vmatprep.subr.bf16.mxu0 0
        %665 = vmatpush2.bf16.msra.mxu0 %v613
        %666 = vmatprep.subr.bf16.mxu0 0
        %667 = vmatpush2.bf16.msra.mxu0 %v612
        %668 = vmatprep.mubr.bf16.mxu0 %v477
        %669 = vmatmul.mubr.bf16.gmra.mxu0 %v476
        %v670 = vpop.f32.mrf.mxu0
        %v671 = vadd.f32 %v378, %v670
        %v672 = vpop.f32.mrf.mxu0
        %v673 = vpop.f32.mrf.mxu0
        %v674 = vadd.f32 %v378, %v673
        %v675 = vpop.f32.mrf.mxu0
        %676 = vmatprep.mubr.bf16.mxu0 %v479
        %677 = vmatmul.mubr.bf16.gmra.mxu0 %v478
        %v678 = vpop.f32.mrf.mxu0
        %v679 = vadd.f32 %v378, %v678
        %v680 = vpop.f32.mrf.mxu0
        %v681 = vpop.f32.mrf.mxu0
        %v682 = vadd.f32 %v378, %v681
        %v683 = vpop.f32.mrf.mxu0
        %684 = vmatprep.mubr.bf16.mxu0 %v481
        %685 = vmatmul.mubr.bf16.gmra.mxu0 %v480
        %v686 = vpop.f32.mrf.mxu0
        %v687 = vadd.f32 %v378, %v686
        %v688 = vpop.f32.mrf.mxu0
        %v689 = vpop.f32.mrf.mxu0
        %v690 = vadd.f32 %v378, %v689
        %v691 = vpop.f32.mrf.mxu0
        %692 = vmatprep.mubr.bf16.mxu0 %v483
        %693 = vmatmul.mubr.bf16.gmra.mxu0 %v482
        %v694 = vpop.f32.mrf.mxu0
        %v695 = vadd.f32 %v378, %v694
        %v696 = vpop.f32.mrf.mxu0
        %v697 = vpop.f32.mrf.mxu0
        %v698 = vadd.f32 %v378, %v697
        %v699 = vpop.f32.mrf.mxu0
        %700 = vmatprep.mubr.bf16.mxu0 %v485
        %701 = vmatmul.mubr.bf16.gmra.mxu0 %v484
        %v702 = vpop.f32.mrf.mxu0
        %v703 = vadd.f32 %v378, %v702
        %v704 = vpop.f32.mrf.mxu0
        %v705 = vpop.f32.mrf.mxu0
        %v706 = vadd.f32 %v378, %v705
        %v707 = vpop.f32.mrf.mxu0
        %708 = vmatprep.mubr.bf16.mxu0 %v487
        %709 = vmatmul.mubr.bf16.gmra.mxu0 %v486
        %v710 = vpop.f32.mrf.mxu0
        %v711 = vadd.f32 %v378, %v710
        %v712 = vpop.f32.mrf.mxu0
        %v713 = vpop.f32.mrf.mxu0
        %v714 = vadd.f32 %v378, %v713
        %v715 = vpop.f32.mrf.mxu0
        %716 = vmatprep.mubr.bf16.mxu0 %v489
        %717 = vmatmul.mubr.bf16.gmra.mxu0 %v488
        %v718 = vpop.f32.mrf.mxu0
        %v719 = vadd.f32 %v378, %v718
        %v720 = vpop.f32.mrf.mxu0
        %v721 = vpop.f32.mrf.mxu0
        %v722 = vadd.f32 %v378, %v721
        %v723 = vpop.f32.mrf.mxu0
        %724 = vmatprep.mubr.bf16.mxu0 %v491
        %725 = vmatmul.mubr.bf16.gmra.mxu0 %v490
        %v726 = vpop.f32.mrf.mxu0
        %v727 = vadd.f32 %v378, %v726
        %v728 = vpop.f32.mrf.mxu0
        %v729 = vpop.f32.mrf.mxu0
        %v730 = vadd.f32 %v378, %v729
        %v731 = vpop.f32.mrf.mxu0
        %732 = vmatprep.mubr.bf16.mxu0 %v493
        %733 = vmatmul.mubr.bf16.gmra.mxu0 %v492
        %v734 = vpop.f32.mrf.mxu0
        %v735 = vadd.f32 %v378, %v734
        %v736 = vpop.f32.mrf.mxu0
        %v737 = vpop.f32.mrf.mxu0
        %v738 = vadd.f32 %v378, %v737
        %v739 = vpop.f32.mrf.mxu0
        %740 = vmatprep.mubr.bf16.mxu0 %v495
        %741 = vmatmul.mubr.bf16.gmra.mxu0 %v494
        %v742 = vpop.f32.mrf.mxu0
        %v743 = vadd.f32 %v378, %v742
        %v744 = vpop.f32.mrf.mxu0
        %v745 = vpop.f32.mrf.mxu0
        %v746 = vadd.f32 %v378, %v745
        %v747 = vpop.f32.mrf.mxu0
        %748 = vmatprep.mubr.bf16.mxu0 %v497
        %749 = vmatmul.mubr.bf16.gmra.mxu0 %v496
        %v750 = vpop.f32.mrf.mxu0
        %v751 = vadd.f32 %v378, %v750
        %v752 = vpop.f32.mrf.mxu0
        %v753 = vpop.f32.mrf.mxu0
        %v754 = vadd.f32 %v378, %v753
        %v755 = vpop.f32.mrf.mxu0
        %756 = vmatprep.mubr.bf16.mxu0 %v499
        %757 = vmatmul.mubr.bf16.gmra.mxu0 %v498
        %v758 = vpop.f32.mrf.mxu0
        %v759 = vadd.f32 %v378, %v758
        %v760 = vpop.f32.mrf.mxu0
        %v761 = vpop.f32.mrf.mxu0
        %v762 = vadd.f32 %v378, %v761
        %v763 = vpop.f32.mrf.mxu0
        %764 = vmatprep.mubr.bf16.mxu0 %v501
        %765 = vmatmul.mubr.bf16.gmra.mxu0 %v500
        %v766 = vpop.f32.mrf.mxu0
        %v767 = vadd.f32 %v378, %v766
        %v768 = vpop.f32.mrf.mxu0
        %v769 = vpop.f32.mrf.mxu0
        %v770 = vadd.f32 %v378, %v769
        %v771 = vpop.f32.mrf.mxu0
        %772 = vmatprep.mubr.bf16.mxu0 %v503
        %773 = vmatmul.mubr.bf16.gmra.mxu0 %v502
        %v774 = vpop.f32.mrf.mxu0
        %v775 = vadd.f32 %v378, %v774
        %v776 = vpop.f32.mrf.mxu0
        %v777 = vpop.f32.mrf.mxu0
        %v778 = vadd.f32 %v378, %v777
        %v779 = vpop.f32.mrf.mxu0
        %780 = vmatprep.mubr.bf16.mxu0 %v505
        %781 = vmatmul.mubr.bf16.gmra.mxu0 %v504
        %v782 = vpop.f32.mrf.mxu0
        %v783 = vadd.f32 %v378, %v782
        %v784 = vpop.f32.mrf.mxu0
        %v785 = vpop.f32.mrf.mxu0
        %v786 = vadd.f32 %v378, %v785
        %v787 = vpop.f32.mrf.mxu0
        %788 = vmatprep.mubr.bf16.mxu0 %v507
        %789 = vmatmul.mubr.bf16.gmra.mxu0 %v506
        %v790 = vpop.f32.mrf.mxu0
        %v791 = vadd.f32 %v378, %v790
        %v792 = vpop.f32.mrf.mxu0
        %v793 = vpop.f32.mrf.mxu0
        %v794 = vadd.f32 %v378, %v793
        %v795 = vpop.f32.mrf.mxu0
        %796 = vdwg.mxu0
        %v797 = vmax.f32 %v671, 0.0
        %v798 = vmax.f32 %v674, 0.0
        %v799 = vmax.f32 %v679, 0.0
        %v800 = vmax.f32 %v682, 0.0
        %v801 = vmax.f32 %v687, 0.0
        %v802 = vmax.f32 %v690, 0.0
        %v803 = vmax.f32 %v695, 0.0
        %v804 = vmax.f32 %v698, 0.0
        %v805 = vmax.f32 %v703, 0.0
        %v806 = vmax.f32 %v706, 0.0
        %v807 = vmax.f32 %v711, 0.0
        %v808 = vmax.f32 %v714, 0.0
        %v809 = vmax.f32 %v719, 0.0
        %v810 = vmax.f32 %v722, 0.0
        %v811 = vmax.f32 %v727, 0.0
        %v812 = vmax.f32 %v730, 0.0
        %v813 = vmax.f32 %v735, 0.0
        %v814 = vmax.f32 %v738, 0.0
        %v815 = vmax.f32 %v743, 0.0
        %v816 = vmax.f32 %v746, 0.0
        %v817 = vmax.f32 %v751, 0.0
        %v818 = vmax.f32 %v754, 0.0
        %v819 = vmax.f32 %v759, 0.0
        %v820 = vmax.f32 %v762, 0.0
        %v821 = vmax.f32 %v767, 0.0
        %v822 = vmax.f32 %v770, 0.0
        %v823 = vmax.f32 %v775, 0.0
        %v824 = vmax.f32 %v778, 0.0
        %v825 = vmax.f32 %v783, 0.0
        %v826 = vmax.f32 %v786, 0.0
        %v827 = vmax.f32 %v791, 0.0
        %v828 = vmax.f32 %v794, 0.0
        %v829 = vpack.c.bf16 %v798, %v797
        %v830 = vpack.c.bf16 %v800, %v799
        %v831 = vpack.c.bf16 %v802, %v801
        %v832 = vpack.c.bf16 %v804, %v803
        %v833 = vpack.c.bf16 %v806, %v805
        %v834 = vpack.c.bf16 %v808, %v807
        %v835 = vpack.c.bf16 %v810, %v809
        %v836 = vpack.c.bf16 %v812, %v811
        %v837 = vpack.c.bf16 %v814, %v813
        %v838 = vpack.c.bf16 %v816, %v815
        %v839 = vpack.c.bf16 %v818, %v817
        %v840 = vpack.c.bf16 %v820, %v819
        %v841 = vpack.c.bf16 %v822, %v821
        %v842 = vpack.c.bf16 %v824, %v823
        %v843 = vpack.c.bf16 %v826, %v825
        %v844 = vpack.c.bf16 %v828, %v827
        %v845 = vld [vmem:[%s3] sm:$0xf]
        %v846 = vld [vmem:[%s3 + $0x4] sm:$0xf]
        %v847 = vld [vmem:[%s3 + $0x8] sm:$0xf]
        %v848 = vld [vmem:[%s3 + $0xc] sm:$0xf]
        %v849 = vld [vmem:[%s3 + $0x10] sm:$0xf]
        %v850 = vld [vmem:[%s3 + $0x14] sm:$0xf]
        %v851 = vld [vmem:[%s3 + $0x18] sm:$0xf]
        %v852 = vld [vmem:[%s3 + $0x1c] sm:$0xf]
        %v853 = vld [vmem:[%s3 + $0x20] sm:$0xf]
        %v854 = vld [vmem:[%s3 + $0x24] sm:$0xf]
        %v855 = vld [vmem:[%s3 + $0x28] sm:$0xf]
        %v856 = vld [vmem:[%s3 + $0x2c] sm:$0xf]
        %v857 = vld [vmem:[%s3 + $0x30] sm:$0xf]
        %v858 = vld [vmem:[%s3 + $0x34] sm:$0xf]
        %v859 = vld [vmem:[%s3 + $0x38] sm:$0xf]
        %v860 = vld [vmem:[%s3 + $0x3c] sm:$0xf]
        %v877 = vunpack.c.l.b16 %v845
        %v878 = vunpack.c.l.b16 %v846
        %v879 = vunpack.c.l.b16 %v847
        %v880 = vunpack.c.l.b16 %v848
        %v881 = vunpack.c.l.b16 %v849
        %v882 = vunpack.c.l.b16 %v850
        %v883 = vunpack.c.l.b16 %v851
        %v884 = vunpack.c.l.b16 %v852
        %v885 = vunpack.c.l.b16 %v853
        %v886 = vunpack.c.l.b16 %v854
        %v887 = vunpack.c.l.b16 %v855
        %v888 = vunpack.c.l.b16 %v856
        %v889 = vunpack.c.l.b16 %v857
        %v890 = vunpack.c.l.b16 %v858
        %v891 = vunpack.c.l.b16 %v859
        %v892 = vunpack.c.l.b16 %v860
        %v893 = vpack.c.b16 %v878, %v877
        %v894 = vpack.c.b16 %v880, %v879
        %v895 = vpack.c.b16 %v882, %v881
        %v896 = vpack.c.b16 %v884, %v883
        %v897 = vpack.c.b16 %v886, %v885
        %v898 = vpack.c.b16 %v888, %v887
        %v899 = vpack.c.b16 %v890, %v889
        %v900 = vpack.c.b16 %v892, %v891
        %909 = vmatprep.subr.bf16.mxu0 0
        %910 = vmatpush1.bf16.msra.mxu0 %v900
        %911 = vmatprep.subr.bf16.mxu0 0
        %912 = vmatpush1.bf16.msra.mxu0 %v899
        %913 = vmatprep.subr.bf16.mxu0 0
        %914 = vmatpush1.bf16.msra.mxu0 %v898
        %915 = vmatprep.subr.bf16.mxu0 0
        %916 = vmatpush1.bf16.msra.mxu0 %v897
        %917 = vmatprep.subr.bf16.mxu0 0
        %918 = vmatpush1.bf16.msra.mxu0 %v896
        %919 = vmatprep.subr.bf16.mxu0 0
        %920 = vmatpush1.bf16.msra.mxu0 %v895
        %921 = vmatprep.subr.bf16.mxu0 0
        %922 = vmatpush1.bf16.msra.mxu0 %v894
        %923 = vmatprep.subr.bf16.mxu0 0
        %924 = vmatpush1.bf16.msra.mxu0 %v893
        %925 = vmatprep.subr.bf16.mxu0 0
        %926 = vmatpush2.bf16.msra.mxu0 0
        %927 = vmatprep.subr.bf16.mxu0 0
        %928 = vmatpush2.bf16.msra.mxu0 0
        %929 = vmatprep.subr.bf16.mxu0 0
        %930 = vmatpush2.bf16.msra.mxu0 0
        %931 = vmatprep.subr.bf16.mxu0 0
        %932 = vmatpush2.bf16.msra.mxu0 0
        %933 = vmatprep.subr.bf16.mxu0 0
        %934 = vmatpush2.bf16.msra.mxu0 0
        %935 = vmatprep.subr.bf16.mxu0 0
        %936 = vmatpush2.bf16.msra.mxu0 0
        %937 = vmatprep.subr.bf16.mxu0 0
        %938 = vmatpush2.bf16.msra.mxu0 0
        %939 = vmatprep.subr.bf16.mxu0 0
        %940 = vmatpush2.bf16.msra.mxu0 0
        %941 = vmatprep.mubr.bf16.mxu0 0
        %942 = vmatmul.mubr.bf16.gmra.mxu0 %v829
        %v943 = vpop.f32.mrf.mxu0
        %v944 = vadd.f32 0.0, %v943
        %v945 = vpop.f32.mrf.mxu0
        %v946 = vpop.f32.mrf.mxu0
        %v947 = vadd.f32 0.0, %v946
        %v948 = vpop.f32.mrf.mxu0
        %949 = vmatprep.mubr.bf16.mxu0 0
        %950 = vmatmul.mubr.bf16.gmra.mxu0 %v830
        %v951 = vpop.f32.mrf.mxu0
        %v952 = vadd.f32 0.0, %v951
        %v953 = vpop.f32.mrf.mxu0
        %v954 = vpop.f32.mrf.mxu0
        %v955 = vadd.f32 0.0, %v954
        %v956 = vpop.f32.mrf.mxu0
        %957 = vmatprep.mubr.bf16.mxu0 0
        %958 = vmatmul.mubr.bf16.gmra.mxu0 %v831
        %v959 = vpop.f32.mrf.mxu0
        %v960 = vadd.f32 0.0, %v959
        %v961 = vpop.f32.mrf.mxu0
        %v962 = vpop.f32.mrf.mxu0
        %v963 = vadd.f32 0.0, %v962
        %v964 = vpop.f32.mrf.mxu0
        %965 = vmatprep.mubr.bf16.mxu0 0
        %966 = vmatmul.mubr.bf16.gmra.mxu0 %v832
        %v967 = vpop.f32.mrf.mxu0
        %v968 = vadd.f32 0.0, %v967
        %v969 = vpop.f32.mrf.mxu0
        %v970 = vpop.f32.mrf.mxu0
        %v971 = vadd.f32 0.0, %v970
        %v972 = vpop.f32.mrf.mxu0
        %973 = vmatprep.mubr.bf16.mxu0 0
        %974 = vmatmul.mubr.bf16.gmra.mxu0 %v833
        %v975 = vpop.f32.mrf.mxu0
        %v976 = vadd.f32 0.0, %v975
        %v977 = vpop.f32.mrf.mxu0
        %v978 = vpop.f32.mrf.mxu0
        %v979 = vadd.f32 0.0, %v978
        %v980 = vpop.f32.mrf.mxu0
        %981 = vmatprep.mubr.bf16.mxu0 0
        %982 = vmatmul.mubr.bf16.gmra.mxu0 %v834
        %v983 = vpop.f32.mrf.mxu0
        %v984 = vadd.f32 0.0, %v983
        %v985 = vpop.f32.mrf.mxu0
        %v986 = vpop.f32.mrf.mxu0
        %v987 = vadd.f32 0.0, %v986
        %v988 = vpop.f32.mrf.mxu0
        %989 = vmatprep.mubr.bf16.mxu0 0
        %990 = vmatmul.mubr.bf16.gmra.mxu0 %v835
        %v991 = vpop.f32.mrf.mxu0
        %v992 = vadd.f32 0.0, %v991
        %v993 = vpop.f32.mrf.mxu0
        %v994 = vpop.f32.mrf.mxu0
        %v995 = vadd.f32 0.0, %v994
        %v996 = vpop.f32.mrf.mxu0
        %997 = vmatprep.mubr.bf16.mxu0 0
        %998 = vmatmul.mubr.bf16.gmra.mxu0 %v836
        %v999 = vpop.f32.mrf.mxu0
        %v1000 = vadd.f32 0.0, %v999
        %v1001 = vpop.f32.mrf.mxu0
        %v1002 = vpop.f32.mrf.mxu0
        %v1003 = vadd.f32 0.0, %v1002
        %v1004 = vpop.f32.mrf.mxu0
        %1005 = vmatprep.mubr.bf16.mxu0 0
        %1006 = vmatmul.mubr.bf16.gmra.mxu0 %v837
        %v1007 = vpop.f32.mrf.mxu0
        %v1008 = vadd.f32 0.0, %v1007
        %v1009 = vpop.f32.mrf.mxu0
        %v1010 = vpop.f32.mrf.mxu0
        %v1011 = vadd.f32 0.0, %v1010
        %v1012 = vpop.f32.mrf.mxu0
        %1013 = vmatprep.mubr.bf16.mxu0 0
        %1014 = vmatmul.mubr.bf16.gmra.mxu0 %v838
        %v1015 = vpop.f32.mrf.mxu0
        %v1016 = vadd.f32 0.0, %v1015
        %v1017 = vpop.f32.mrf.mxu0
        %v1018 = vpop.f32.mrf.mxu0
        %v1019 = vadd.f32 0.0, %v1018
        %v1020 = vpop.f32.mrf.mxu0
        %1021 = vmatprep.mubr.bf16.mxu0 0
        %1022 = vmatmul.mubr.bf16.gmra.mxu0 %v839
        %v1023 = vpop.f32.mrf.mxu0
        %v1024 = vadd.f32 0.0, %v1023
        %v1025 = vpop.f32.mrf.mxu0
        %v1026 = vpop.f32.mrf.mxu0
        %v1027 = vadd.f32 0.0, %v1026
        %v1028 = vpop.f32.mrf.mxu0
        %1029 = vmatprep.mubr.bf16.mxu0 0
        %1030 = vmatmul.mubr.bf16.gmra.mxu0 %v840
        %v1031 = vpop.f32.mrf.mxu0
        %v1032 = vadd.f32 0.0, %v1031
        %v1033 = vpop.f32.mrf.mxu0
        %v1034 = vpop.f32.mrf.mxu0
        %v1035 = vadd.f32 0.0, %v1034
        %v1036 = vpop.f32.mrf.mxu0
        %1037 = vmatprep.mubr.bf16.mxu0 0
        %1038 = vmatmul.mubr.bf16.gmra.mxu0 %v841
        %v1039 = vpop.f32.mrf.mxu0
        %v1040 = vadd.f32 0.0, %v1039
        %v1041 = vpop.f32.mrf.mxu0
        %v1042 = vpop.f32.mrf.mxu0
        %v1043 = vadd.f32 0.0, %v1042
        %v1044 = vpop.f32.mrf.mxu0
        %1045 = vmatprep.mubr.bf16.mxu0 0
        %1046 = vmatmul.mubr.bf16.gmra.mxu0 %v842
        %v1047 = vpop.f32.mrf.mxu0
        %v1048 = vadd.f32 0.0, %v1047
        %v1049 = vpop.f32.mrf.mxu0
        %v1050 = vpop.f32.mrf.mxu0
        %v1051 = vadd.f32 0.0, %v1050
        %v1052 = vpop.f32.mrf.mxu0
        %1053 = vmatprep.mubr.bf16.mxu0 0
        %1054 = vmatmul.mubr.bf16.gmra.mxu0 %v843
        %v1055 = vpop.f32.mrf.mxu0
        %v1056 = vadd.f32 0.0, %v1055
        %v1057 = vpop.f32.mrf.mxu0
        %v1058 = vpop.f32.mrf.mxu0
        %v1059 = vadd.f32 0.0, %v1058
        %v1060 = vpop.f32.mrf.mxu0
        %1061 = vmatprep.mubr.bf16.mxu0 0
        %1062 = vmatmul.mubr.bf16.gmra.mxu0 %v844
        %v1063 = vpop.f32.mrf.mxu0
        %v1064 = vadd.f32 0.0, %v1063
        %v1065 = vpop.f32.mrf.mxu0
        %v1066 = vpop.f32.mrf.mxu0
        %v1067 = vadd.f32 0.0, %v1066
        %v1068 = vpop.f32.mrf.mxu0
        %1069 = vdwg.mxu0
        %s1070 = smul.u32 %s21, 256
        %v1071 = vpack.c.bf16 %v947, %v944
        %v1072 = vpack.c.bf16 %v955, %v952
        %v1073 = vpack.c.bf16 %v963, %v960
        %v1074 = vpack.c.bf16 %v971, %v968
        %v1075 = vpack.c.bf16 %v979, %v976
        %v1076 = vpack.c.bf16 %v987, %v984
        %v1077 = vpack.c.bf16 %v995, %v992
        %v1078 = vpack.c.bf16 %v1003, %v1000
        %v1079 = vpack.c.bf16 %v1011, %v1008
        %v1080 = vpack.c.bf16 %v1019, %v1016
        %v1081 = vpack.c.bf16 %v1027, %v1024
        %v1082 = vpack.c.bf16 %v1035, %v1032
        %v1083 = vpack.c.bf16 %v1043, %v1040
        %v1084 = vpack.c.bf16 %v1051, %v1048
        %v1085 = vpack.c.bf16 %v1059, %v1056
        %v1086 = vpack.c.bf16 %v1067, %v1064
        %v1103 = vunpack.c.l.b16 %v1071
        %v1104 = vunpack.c.h.b16 %v1071
        %v1105 = vunpack.c.l.b16 %v1072
        %v1106 = vunpack.c.h.b16 %v1072
        %v1107 = vunpack.c.l.b16 %v1073
        %v1108 = vunpack.c.h.b16 %v1073
        %v1109 = vunpack.c.l.b16 %v1074
        %v1110 = vunpack.c.h.b16 %v1074
        %v1111 = vunpack.c.l.b16 %v1075
        %v1112 = vunpack.c.h.b16 %v1075
        %v1113 = vunpack.c.l.b16 %v1076
        %v1114 = vunpack.c.h.b16 %v1076
        %v1115 = vunpack.c.l.b16 %v1077
        %v1116 = vunpack.c.h.b16 %v1077
        %v1117 = vunpack.c.l.b16 %v1078
        %v1118 = vunpack.c.h.b16 %v1078
        %v1119 = vunpack.c.l.b16 %v1079
        %v1120 = vunpack.c.h.b16 %v1079
        %v1121 = vunpack.c.l.b16 %v1080
        %v1122 = vunpack.c.h.b16 %v1080
        %v1123 = vunpack.c.l.b16 %v1081
        %v1124 = vunpack.c.h.b16 %v1081
        %v1125 = vunpack.c.l.b16 %v1082
        %v1126 = vunpack.c.h.b16 %v1082
        %v1127 = vunpack.c.l.b16 %v1083
        %v1128 = vunpack.c.h.b16 %v1083
        %v1129 = vunpack.c.l.b16 %v1084
        %v1130 = vunpack.c.h.b16 %v1084
        %v1131 = vunpack.c.l.b16 %v1085
        %v1132 = vunpack.c.h.b16 %v1085
        %v1133 = vunpack.c.l.b16 %v1086
        %v1134 = vunpack.c.h.b16 %v1086
        %v1135 = vpack.c.b16 %v1103, %v1103
        %v1136 = vpack.c.b16 %v1104, %v1104
        %v1137 = vpack.c.b16 %v1105, %v1105
        %v1138 = vpack.c.b16 %v1106, %v1106
        %v1139 = vpack.c.b16 %v1107, %v1107
        %v1140 = vpack.c.b16 %v1108, %v1108
        %v1141 = vpack.c.b16 %v1109, %v1109
        %v1142 = vpack.c.b16 %v1110, %v1110
        %v1143 = vpack.c.b16 %v1111, %v1111
        %v1144 = vpack.c.b16 %v1112, %v1112
        %v1145 = vpack.c.b16 %v1113, %v1113
        %v1146 = vpack.c.b16 %v1114, %v1114
        %v1147 = vpack.c.b16 %v1115, %v1115
        %v1148 = vpack.c.b16 %v1116, %v1116
        %v1149 = vpack.c.b16 %v1117, %v1117
        %v1150 = vpack.c.b16 %v1118, %v1118
        %v1151 = vpack.c.b16 %v1119, %v1119
        %v1152 = vpack.c.b16 %v1120, %v1120
        %v1153 = vpack.c.b16 %v1121, %v1121
        %v1154 = vpack.c.b16 %v1122, %v1122
        %v1155 = vpack.c.b16 %v1123, %v1123
        %v1156 = vpack.c.b16 %v1124, %v1124
        %v1157 = vpack.c.b16 %v1125, %v1125
        %v1158 = vpack.c.b16 %v1126, %v1126
        %v1159 = vpack.c.b16 %v1127, %v1127
        %v1160 = vpack.c.b16 %v1128, %v1128
        %v1161 = vpack.c.b16 %v1129, %v1129
        %v1162 = vpack.c.b16 %v1130, %v1130
        %v1163 = vpack.c.b16 %v1131, %v1131
        %v1164 = vpack.c.b16 %v1132, %v1132
        %v1165 = vpack.c.b16 %v1133, %v1133
        %v1166 = vpack.c.b16 %v1134, %v1134
        %s1199 = sshra.s32 %s1070, 3
        %s1200 = sand.u32 %s1070, 7
        %s1201 = smul.addr %s1199, 4
        %s1202 = scalar_lea.vmem [#allocation3], %s1201
        %1203 = vst [vmem:[%s1202] sm:$0xf] %v1135
        %1204 = vst [vmem:[%s1202 + $0x4] sm:$0xf] %v1136
        %1205 = vst [vmem:[%s1202 + $0x8] sm:$0xf] %v1137
        %1206 = vst [vmem:[%s1202 + $0xc] sm:$0xf] %v1138
        %1207 = vst [vmem:[%s1202 + $0x10] sm:$0xf] %v1139
        %1208 = vst [vmem:[%s1202 + $0x14] sm:$0xf] %v1140
        %1209 = vst [vmem:[%s1202 + $0x18] sm:$0xf] %v1141
        %1210 = vst [vmem:[%s1202 + $0x1c] sm:$0xf] %v1142
        %1211 = vst [vmem:[%s1202 + $0x20] sm:$0xf] %v1143
        %1212 = vst [vmem:[%s1202 + $0x24] sm:$0xf] %v1144
        %1213 = vst [vmem:[%s1202 + $0x28] sm:$0xf] %v1145
        %1214 = vst [vmem:[%s1202 + $0x2c] sm:$0xf] %v1146
        %1215 = vst [vmem:[%s1202 + $0x30] sm:$0xf] %v1147
        %1216 = vst [vmem:[%s1202 + $0x34] sm:$0xf] %v1148
        %1217 = vst [vmem:[%s1202 + $0x38] sm:$0xf] %v1149
        %1218 = vst [vmem:[%s1202 + $0x3c] sm:$0xf] %v1150
        %1219 = vst [vmem:[%s1202 + $0x40] sm:$0xf] %v1151
        %1220 = vst [vmem:[%s1202 + $0x44] sm:$0xf] %v1152
        %1221 = vst [vmem:[%s1202 + $0x48] sm:$0xf] %v1153
        %1222 = vst [vmem:[%s1202 + $0x4c] sm:$0xf] %v1154
        %1223 = vst [vmem:[%s1202 + $0x50] sm:$0xf] %v1155
        %1224 = vst [vmem:[%s1202 + $0x54] sm:$0xf] %v1156
        %1225 = vst [vmem:[%s1202 + $0x58] sm:$0xf] %v1157
        %1226 = vst [vmem:[%s1202 + $0x5c] sm:$0xf] %v1158
        %1227 = vst [vmem:[%s1202 + $0x60] sm:$0xf] %v1159
        %1228 = vst [vmem:[%s1202 + $0x64] sm:$0xf] %v1160
        %1229 = vst [vmem:[%s1202 + $0x68] sm:$0xf] %v1161
        %1230 = vst [vmem:[%s1202 + $0x6c] sm:$0xf] %v1162
        %1231 = vst [vmem:[%s1202 + $0x70] sm:$0xf] %v1163
        %1232 = vst [vmem:[%s1202 + $0x74] sm:$0xf] %v1164
        %1233 = vst [vmem:[%s1202 + $0x78] sm:$0xf] %v1165
        %1234 = vst [vmem:[%s1202 + $0x7c] sm:$0xf] %v1166
      $region79: #{gcn_forward.1} parent=35 // pred_fallthru
        _
      %p1235 = scmp.eq.s32.totalorder %s20, 1
      // Predicated region
      $region80: #{gcn_forward.1} parent=35 // pred_check
        %p1236 = pneg %p1235
      $region81: #{gcn_forward.1} parent=35 // pred_check_branch
        %1238 = sbr.rel (%p1236) target = $region83
      $region82: #{gcn_forward.1} parent=35 // pred_region
        %v1239 = vld [vmem:[%s212] sm:$0xff]
        %v1240 = vld [vmem:[%s212 + $0x8] sm:$0xff]
        %v1241 = vld [vmem:[%s212 + $0x10] sm:$0xff]
        %v1242 = vld [vmem:[%s212 + $0x18] sm:$0xff]
        %v1243 = vld [vmem:[%s212 + $0x20] sm:$0xff]
        %v1244 = vld [vmem:[%s212 + $0x28] sm:$0xff]
        %v1245 = vld [vmem:[%s212 + $0x30] sm:$0xff]
        %v1246 = vld [vmem:[%s212 + $0x38] sm:$0xff]
        %v1247 = vld [vmem:[%s212 + $0x40] sm:$0xff]
        %v1248 = vld [vmem:[%s212 + $0x48] sm:$0xff]
        %v1249 = vld [vmem:[%s212 + $0x50] sm:$0xff]
        %v1250 = vld [vmem:[%s212 + $0x58] sm:$0xff]
        %v1251 = vld [vmem:[%s212 + $0x60] sm:$0xff]
        %v1252 = vld [vmem:[%s212 + $0x68] sm:$0xff]
        %v1253 = vld [vmem:[%s212 + $0x70] sm:$0xff]
        %v1254 = vld [vmem:[%s212 + $0x78] sm:$0xff]
        %v1255 = vld [vmem:[%s212 + $0x80] sm:$0xff]
        %v1256 = vld [vmem:[%s212 + $0x88] sm:$0xff]
        %v1257 = vld [vmem:[%s212 + $0x90] sm:$0xff]
        %v1258 = vld [vmem:[%s212 + $0x98] sm:$0xff]
        %v1259 = vld [vmem:[%s212 + $0xa0] sm:$0xff]
        %v1260 = vld [vmem:[%s212 + $0xa8] sm:$0xff]
        %v1261 = vld [vmem:[%s212 + $0xb0] sm:$0xff]
        %v1262 = vld [vmem:[%s212 + $0xb8] sm:$0xff]
        %v1263 = vld [vmem:[%s212 + $0xc0] sm:$0xff]
        %v1264 = vld [vmem:[%s212 + $0xc8] sm:$0xff]
        %v1265 = vld [vmem:[%s212 + $0xd0] sm:$0xff]
        %v1266 = vld [vmem:[%s212 + $0xd8] sm:$0xff]
        %v1267 = vld [vmem:[%s212 + $0xe0] sm:$0xff]
        %v1268 = vld [vmem:[%s212 + $0xe8] sm:$0xff]
        %v1269 = vld [vmem:[%s212 + $0xf0] sm:$0xff]
        %v1270 = vld [vmem:[%s212 + $0xf8] sm:$0xff]
        %v1271 = vld [vmem:[#allocation3] sm:$0xf]
        %v1272 = vld [vmem:[#allocation3 + $0x4] sm:$0xf]
        %v1273 = vld [vmem:[#allocation3 + $0x8] sm:$0xf]
        %v1274 = vld [vmem:[#allocation3 + $0xc] sm:$0xf]
        %v1275 = vld [vmem:[#allocation3 + $0x10] sm:$0xf]
        %v1276 = vld [vmem:[#allocation3 + $0x14] sm:$0xf]
        %v1277 = vld [vmem:[#allocation3 + $0x18] sm:$0xf]
        %v1278 = vld [vmem:[#allocation3 + $0x1c] sm:$0xf]
        %v1279 = vld [vmem:[#allocation3 + $0x20] sm:$0xf]
        %v1280 = vld [vmem:[#allocation3 + $0x24] sm:$0xf]
        %v1281 = vld [vmem:[#allocation3 + $0x28] sm:$0xf]
        %v1282 = vld [vmem:[#allocation3 + $0x2c] sm:$0xf]
        %v1283 = vld [vmem:[#allocation3 + $0x30] sm:$0xf]
        %v1284 = vld [vmem:[#allocation3 + $0x34] sm:$0xf]
        %v1285 = vld [vmem:[#allocation3 + $0x38] sm:$0xf]
        %v1286 = vld [vmem:[#allocation3 + $0x3c] sm:$0xf]
        %v1287 = vld [vmem:[#allocation3 + $0x40] sm:$0xf]
        %v1288 = vld [vmem:[#allocation3 + $0x44] sm:$0xf]
        %v1289 = vld [vmem:[#allocation3 + $0x48] sm:$0xf]
        %v1290 = vld [vmem:[#allocation3 + $0x4c] sm:$0xf]
        %v1291 = vld [vmem:[#allocation3 + $0x50] sm:$0xf]
        %v1292 = vld [vmem:[#allocation3 + $0x54] sm:$0xf]
        %v1293 = vld [vmem:[#allocation3 + $0x58] sm:$0xf]
        %v1294 = vld [vmem:[#allocation3 + $0x5c] sm:$0xf]
        %v1295 = vld [vmem:[#allocation3 + $0x60] sm:$0xf]
        %v1296 = vld [vmem:[#allocation3 + $0x64] sm:$0xf]
        %v1297 = vld [vmem:[#allocation3 + $0x68] sm:$0xf]
        %v1298 = vld [vmem:[#allocation3 + $0x6c] sm:$0xf]
        %v1299 = vld [vmem:[#allocation3 + $0x70] sm:$0xf]
        %v1300 = vld [vmem:[#allocation3 + $0x74] sm:$0xf]
        %v1301 = vld [vmem:[#allocation3 + $0x78] sm:$0xf]
        %v1302 = vld [vmem:[#allocation3 + $0x7c] sm:$0xf]
        %v1303 = vld [vmem:[%s4] sm:$0x1]
        %v1305 = vlaneseq
        %v1306 = vshrl.u32 %v1305, 7
        %v1307 = vsub.s32 0, %v1306
        %v1308 = vrot.slane %v1303, %v1307
        %v1342 = vunpack.c.l.b16 %v1239
        %v1343 = vunpack.c.h.b16 %v1239
        %v1344 = vunpack.c.l.b16 %v1240
        %v1345 = vunpack.c.h.b16 %v1240
        %v1346 = vunpack.c.l.b16 %v1241
        %v1347 = vunpack.c.h.b16 %v1241
        %v1348 = vunpack.c.l.b16 %v1242
        %v1349 = vunpack.c.h.b16 %v1242
        %v1350 = vunpack.c.l.b16 %v1243
        %v1351 = vunpack.c.h.b16 %v1243
        %v1352 = vunpack.c.l.b16 %v1244
        %v1353 = vunpack.c.h.b16 %v1244
        %v1354 = vunpack.c.l.b16 %v1245
        %v1355 = vunpack.c.h.b16 %v1245
        %v1356 = vunpack.c.l.b16 %v1246
        %v1357 = vunpack.c.h.b16 %v1246
        %v1358 = vunpack.c.l.b16 %v1247
        %v1359 = vunpack.c.h.b16 %v1247
        %v1360 = vunpack.c.l.b16 %v1248
        %v1361 = vunpack.c.h.b16 %v1248
        %v1362 = vunpack.c.l.b16 %v1249
        %v1363 = vunpack.c.h.b16 %v1249
        %v1364 = vunpack.c.l.b16 %v1250
        %v1365 = vunpack.c.h.b16 %v1250
        %v1366 = vunpack.c.l.b16 %v1251
        %v1367 = vunpack.c.h.b16 %v1251
        %v1368 = vunpack.c.l.b16 %v1252
        %v1369 = vunpack.c.h.b16 %v1252
        %v1370 = vunpack.c.l.b16 %v1253
        %v1371 = vunpack.c.h.b16 %v1253
        %v1372 = vunpack.c.l.b16 %v1254
        %v1373 = vunpack.c.h.b16 %v1254
        %v1374 = vunpack.c.l.b16 %v1255
        %v1375 = vunpack.c.h.b16 %v1255
        %v1376 = vunpack.c.l.b16 %v1256
        %v1377 = vunpack.c.h.b16 %v1256
        %v1378 = vunpack.c.l.b16 %v1257
        %v1379 = vunpack.c.h.b16 %v1257
        %v1380 = vunpack.c.l.b16 %v1258
        %v1381 = vunpack.c.h.b16 %v1258
        %v1382 = vunpack.c.l.b16 %v1259
        %v1383 = vunpack.c.h.b16 %v1259
        %v1384 = vunpack.c.l.b16 %v1260
        %v1385 = vunpack.c.h.b16 %v1260
        %v1386 = vunpack.c.l.b16 %v1261
        %v1387 = vunpack.c.h.b16 %v1261
        %v1388 = vunpack.c.l.b16 %v1262
        %v1389 = vunpack.c.h.b16 %v1262
        %v1390 = vunpack.c.l.b16 %v1263
        %v1391 = vunpack.c.h.b16 %v1263
        %v1392 = vunpack.c.l.b16 %v1264
        %v1393 = vunpack.c.h.b16 %v1264
        %v1394 = vunpack.c.l.b16 %v1265
        %v1395 = vunpack.c.h.b16 %v1265
        %v1396 = vunpack.c.l.b16 %v1266
        %v1397 = vunpack.c.h.b16 %v1266
        %v1398 = vunpack.c.l.b16 %v1267
        %v1399 = vunpack.c.h.b16 %v1267
        %v1400 = vunpack.c.l.b16 %v1268
        %v1401 = vunpack.c.h.b16 %v1268
        %v1402 = vunpack.c.l.b16 %v1269
        %v1403 = vunpack.c.h.b16 %v1269
        %v1404 = vunpack.c.l.b16 %v1270
        %v1405 = vunpack.c.h.b16 %v1270
        %v1406 = vpack.c.b16 %v1344, %v1342
        %v1407 = vpack.c.b16 %v1345, %v1343
        %v1408 = vpack.c.b16 %v1348, %v1346
        %v1409 = vpack.c.b16 %v1349, %v1347
        %v1410 = vpack.c.b16 %v1352, %v1350
        %v1411 = vpack.c.b16 %v1353, %v1351
        %v1412 = vpack.c.b16 %v1356, %v1354
        %v1413 = vpack.c.b16 %v1357, %v1355
        %v1414 = vpack.c.b16 %v1360, %v1358
        %v1415 = vpack.c.b16 %v1361, %v1359
        %v1416 = vpack.c.b16 %v1364, %v1362
        %v1417 = vpack.c.b16 %v1365, %v1363
        %v1418 = vpack.c.b16 %v1368, %v1366
        %v1419 = vpack.c.b16 %v1369, %v1367
        %v1420 = vpack.c.b16 %v1372, %v1370
        %v1421 = vpack.c.b16 %v1373, %v1371
        %v1422 = vpack.c.b16 %v1376, %v1374
        %v1423 = vpack.c.b16 %v1377, %v1375
        %v1424 = vpack.c.b16 %v1380, %v1378
        %v1425 = vpack.c.b16 %v1381, %v1379
        %v1426 = vpack.c.b16 %v1384, %v1382
        %v1427 = vpack.c.b16 %v1385, %v1383
        %v1428 = vpack.c.b16 %v1388, %v1386
        %v1429 = vpack.c.b16 %v1389, %v1387
        %v1430 = vpack.c.b16 %v1392, %v1390
        %v1431 = vpack.c.b16 %v1393, %v1391
        %v1432 = vpack.c.b16 %v1396, %v1394
        %v1433 = vpack.c.b16 %v1397, %v1395
        %v1434 = vpack.c.b16 %v1400, %v1398
        %v1435 = vpack.c.b16 %v1401, %v1399
        %v1436 = vpack.c.b16 %v1404, %v1402
        %v1437 = vpack.c.b16 %v1405, %v1403
        %v1502 = vunpack.c.l.b16 %v1271
        %v1503 = vunpack.c.l.b16 %v1272
        %v1504 = vunpack.c.l.b16 %v1273
        %v1505 = vunpack.c.l.b16 %v1274
        %v1506 = vunpack.c.l.b16 %v1275
        %v1507 = vunpack.c.l.b16 %v1276
        %v1508 = vunpack.c.l.b16 %v1277
        %v1509 = vunpack.c.l.b16 %v1278
        %v1510 = vunpack.c.l.b16 %v1279
        %v1511 = vunpack.c.l.b16 %v1280
        %v1512 = vunpack.c.l.b16 %v1281
        %v1513 = vunpack.c.l.b16 %v1282
        %v1514 = vunpack.c.l.b16 %v1283
        %v1515 = vunpack.c.l.b16 %v1284
        %v1516 = vunpack.c.l.b16 %v1285
        %v1517 = vunpack.c.l.b16 %v1286
        %v1518 = vunpack.c.l.b16 %v1287
        %v1519 = vunpack.c.l.b16 %v1288
        %v1520 = vunpack.c.l.b16 %v1289
        %v1521 = vunpack.c.l.b16 %v1290
        %v1522 = vunpack.c.l.b16 %v1291
        %v1523 = vunpack.c.l.b16 %v1292
        %v1524 = vunpack.c.l.b16 %v1293
        %v1525 = vunpack.c.l.b16 %v1294
        %v1526 = vunpack.c.l.b16 %v1295
        %v1527 = vunpack.c.l.b16 %v1296
        %v1528 = vunpack.c.l.b16 %v1297
        %v1529 = vunpack.c.l.b16 %v1298
        %v1530 = vunpack.c.l.b16 %v1299
        %v1531 = vunpack.c.l.b16 %v1300
        %v1532 = vunpack.c.l.b16 %v1301
        %v1533 = vunpack.c.l.b16 %v1302
        %v1534 = vpack.c.b16 %v1503, %v1502
        %v1535 = vpack.c.b16 %v1505, %v1504
        %v1536 = vpack.c.b16 %v1507, %v1506
        %v1537 = vpack.c.b16 %v1509, %v1508
        %v1538 = vpack.c.b16 %v1511, %v1510
        %v1539 = vpack.c.b16 %v1513, %v1512
        %v1540 = vpack.c.b16 %v1515, %v1514
        %v1541 = vpack.c.b16 %v1517, %v1516
        %v1542 = vpack.c.b16 %v1519, %v1518
        %v1543 = vpack.c.b16 %v1521, %v1520
        %v1544 = vpack.c.b16 %v1523, %v1522
        %v1545 = vpack.c.b16 %v1525, %v1524
        %v1546 = vpack.c.b16 %v1527, %v1526
        %v1547 = vpack.c.b16 %v1529, %v1528
        %v1548 = vpack.c.b16 %v1531, %v1530
        %v1549 = vpack.c.b16 %v1533, %v1532
        %1566 = vmatprep.subr.bf16.mxu0 0
        %1567 = vmatpush1.bf16.msra.mxu0 %v1541
        %1568 = vmatprep.subr.bf16.mxu0 0
        %1569 = vmatpush1.bf16.msra.mxu0 %v1540
        %1570 = vmatprep.subr.bf16.mxu0 0
        %1571 = vmatpush1.bf16.msra.mxu0 %v1539
        %1572 = vmatprep.subr.bf16.mxu0 0
        %1573 = vmatpush1.bf16.msra.mxu0 %v1538
        %1574 = vmatprep.subr.bf16.mxu0 0
        %1575 = vmatpush1.bf16.msra.mxu0 %v1537
        %1576 = vmatprep.subr.bf16.mxu0 0
        %1577 = vmatpush1.bf16.msra.mxu0 %v1536
        %1578 = vmatprep.subr.bf16.mxu0 0
        %1579 = vmatpush1.bf16.msra.mxu0 %v1535
        %1580 = vmatprep.subr.bf16.mxu0 0
        %1581 = vmatpush1.bf16.msra.mxu0 %v1534
        %1582 = vmatprep.subr.bf16.mxu0 0
        %1583 = vmatpush2.bf16.msra.mxu0 %v1549
        %1584 = vmatprep.subr.bf16.mxu0 0
        %1585 = vmatpush2.bf16.msra.mxu0 %v1548
        %1586 = vmatprep.subr.bf16.mxu0 0
        %1587 = vmatpush2.bf16.msra.mxu0 %v1547
        %1588 = vmatprep.subr.bf16.mxu0 0
        %1589 = vmatpush2.bf16.msra.mxu0 %v1546
        %1590 = vmatprep.subr.bf16.mxu0 0
        %1591 = vmatpush2.bf16.msra.mxu0 %v1545
        %1592 = vmatprep.subr.bf16.mxu0 0
        %1593 = vmatpush2.bf16.msra.mxu0 %v1544
        %1594 = vmatprep.subr.bf16.mxu0 0
        %1595 = vmatpush2.bf16.msra.mxu0 %v1543
        %1596 = vmatprep.subr.bf16.mxu0 0
        %1597 = vmatpush2.bf16.msra.mxu0 %v1542
        %1598 = vmatprep.mubr.bf16.mxu0 %v1407
        %1599 = vmatmul.mubr.bf16.gmra.mxu0 %v1406
        %v1600 = vpop.f32.mrf.mxu0
        %v1601 = vadd.f32 %v1308, %v1600
        %v1602 = vpop.f32.mrf.mxu0
        %v1603 = vpop.f32.mrf.mxu0
        %v1604 = vadd.f32 %v1308, %v1603
        %v1605 = vpop.f32.mrf.mxu0
        %1606 = vmatprep.mubr.bf16.mxu0 %v1409
        %1607 = vmatmul.mubr.bf16.gmra.mxu0 %v1408
        %v1608 = vpop.f32.mrf.mxu0
        %v1609 = vadd.f32 %v1308, %v1608
        %v1610 = vpop.f32.mrf.mxu0
        %v1611 = vpop.f32.mrf.mxu0
        %v1612 = vadd.f32 %v1308, %v1611
        %v1613 = vpop.f32.mrf.mxu0
        %1614 = vmatprep.mubr.bf16.mxu0 %v1411
        %1615 = vmatmul.mubr.bf16.gmra.mxu0 %v1410
        %v1616 = vpop.f32.mrf.mxu0
        %v1617 = vadd.f32 %v1308, %v1616
        %v1618 = vpop.f32.mrf.mxu0
        %v1619 = vpop.f32.mrf.mxu0
        %v1620 = vadd.f32 %v1308, %v1619
        %v1621 = vpop.f32.mrf.mxu0
        %1622 = vmatprep.mubr.bf16.mxu0 %v1413
        %1623 = vmatmul.mubr.bf16.gmra.mxu0 %v1412
        %v1624 = vpop.f32.mrf.mxu0
        %v1625 = vadd.f32 %v1308, %v1624
        %v1626 = vpop.f32.mrf.mxu0
        %v1627 = vpop.f32.mrf.mxu0
        %v1628 = vadd.f32 %v1308, %v1627
        %v1629 = vpop.f32.mrf.mxu0
        %1630 = vmatprep.mubr.bf16.mxu0 %v1415
        %1631 = vmatmul.mubr.bf16.gmra.mxu0 %v1414
        %v1632 = vpop.f32.mrf.mxu0
        %v1633 = vadd.f32 %v1308, %v1632
        %v1634 = vpop.f32.mrf.mxu0
        %v1635 = vpop.f32.mrf.mxu0
        %v1636 = vadd.f32 %v1308, %v1635
        %v1637 = vpop.f32.mrf.mxu0
        %1638 = vmatprep.mubr.bf16.mxu0 %v1417
        %1639 = vmatmul.mubr.bf16.gmra.mxu0 %v1416
        %v1640 = vpop.f32.mrf.mxu0
        %v1641 = vadd.f32 %v1308, %v1640
        %v1642 = vpop.f32.mrf.mxu0
        %v1643 = vpop.f32.mrf.mxu0
        %v1644 = vadd.f32 %v1308, %v1643
        %v1645 = vpop.f32.mrf.mxu0
        %1646 = vmatprep.mubr.bf16.mxu0 %v1419
        %1647 = vmatmul.mubr.bf16.gmra.mxu0 %v1418
        %v1648 = vpop.f32.mrf.mxu0
        %v1649 = vadd.f32 %v1308, %v1648
        %v1650 = vpop.f32.mrf.mxu0
        %v1651 = vpop.f32.mrf.mxu0
        %v1652 = vadd.f32 %v1308, %v1651
        %v1653 = vpop.f32.mrf.mxu0
        %1654 = vmatprep.mubr.bf16.mxu0 %v1421
        %1655 = vmatmul.mubr.bf16.gmra.mxu0 %v1420
        %v1656 = vpop.f32.mrf.mxu0
        %v1657 = vadd.f32 %v1308, %v1656
        %v1658 = vpop.f32.mrf.mxu0
        %v1659 = vpop.f32.mrf.mxu0
        %v1660 = vadd.f32 %v1308, %v1659
        %v1661 = vpop.f32.mrf.mxu0
        %1662 = vmatprep.mubr.bf16.mxu0 %v1423
        %1663 = vmatmul.mubr.bf16.gmra.mxu0 %v1422
        %v1664 = vpop.f32.mrf.mxu0
        %v1665 = vadd.f32 %v1308, %v1664
        %v1666 = vpop.f32.mrf.mxu0
        %v1667 = vpop.f32.mrf.mxu0
        %v1668 = vadd.f32 %v1308, %v1667
        %v1669 = vpop.f32.mrf.mxu0
        %1670 = vmatprep.mubr.bf16.mxu0 %v1425
        %1671 = vmatmul.mubr.bf16.gmra.mxu0 %v1424
        %v1672 = vpop.f32.mrf.mxu0
        %v1673 = vadd.f32 %v1308, %v1672
        %v1674 = vpop.f32.mrf.mxu0
        %v1675 = vpop.f32.mrf.mxu0
        %v1676 = vadd.f32 %v1308, %v1675
        %v1677 = vpop.f32.mrf.mxu0
        %1678 = vmatprep.mubr.bf16.mxu0 %v1427
        %1679 = vmatmul.mubr.bf16.gmra.mxu0 %v1426
        %v1680 = vpop.f32.mrf.mxu0
        %v1681 = vadd.f32 %v1308, %v1680
        %v1682 = vpop.f32.mrf.mxu0
        %v1683 = vpop.f32.mrf.mxu0
        %v1684 = vadd.f32 %v1308, %v1683
        %v1685 = vpop.f32.mrf.mxu0
        %1686 = vmatprep.mubr.bf16.mxu0 %v1429
        %1687 = vmatmul.mubr.bf16.gmra.mxu0 %v1428
        %v1688 = vpop.f32.mrf.mxu0
        %v1689 = vadd.f32 %v1308, %v1688
        %v1690 = vpop.f32.mrf.mxu0
        %v1691 = vpop.f32.mrf.mxu0
        %v1692 = vadd.f32 %v1308, %v1691
        %v1693 = vpop.f32.mrf.mxu0
        %1694 = vmatprep.mubr.bf16.mxu0 %v1431
        %1695 = vmatmul.mubr.bf16.gmra.mxu0 %v1430
        %v1696 = vpop.f32.mrf.mxu0
        %v1697 = vadd.f32 %v1308, %v1696
        %v1698 = vpop.f32.mrf.mxu0
        %v1699 = vpop.f32.mrf.mxu0
        %v1700 = vadd.f32 %v1308, %v1699
        %v1701 = vpop.f32.mrf.mxu0
        %1702 = vmatprep.mubr.bf16.mxu0 %v1433
        %1703 = vmatmul.mubr.bf16.gmra.mxu0 %v1432
        %v1704 = vpop.f32.mrf.mxu0
        %v1705 = vadd.f32 %v1308, %v1704
        %v1706 = vpop.f32.mrf.mxu0
        %v1707 = vpop.f32.mrf.mxu0
        %v1708 = vadd.f32 %v1308, %v1707
        %v1709 = vpop.f32.mrf.mxu0
        %1710 = vmatprep.mubr.bf16.mxu0 %v1435
        %1711 = vmatmul.mubr.bf16.gmra.mxu0 %v1434
        %v1712 = vpop.f32.mrf.mxu0
        %v1713 = vadd.f32 %v1308, %v1712
        %v1714 = vpop.f32.mrf.mxu0
        %v1715 = vpop.f32.mrf.mxu0
        %v1716 = vadd.f32 %v1308, %v1715
        %v1717 = vpop.f32.mrf.mxu0
        %1718 = vmatprep.mubr.bf16.mxu0 %v1437
        %1719 = vmatmul.mubr.bf16.gmra.mxu0 %v1436
        %v1720 = vpop.f32.mrf.mxu0
        %v1721 = vadd.f32 %v1308, %v1720
        %v1722 = vpop.f32.mrf.mxu0
        %v1723 = vpop.f32.mrf.mxu0
        %v1724 = vadd.f32 %v1308, %v1723
        %v1725 = vpop.f32.mrf.mxu0
        %1726 = vdwg.mxu0
        %v1727 = vlaneseq
        %v1728 = vand.u32 %v1727, 127
        %vm1729 = vcmp.lt.s32.totalorder %v1728, 4
        %v1730 = vsel %vm1729, %v1601, -1e+30
        %v1731 = vsel %vm1729, %v1604, -1e+30
        %v1732 = vsel %vm1729, %v1609, -1e+30
        %v1733 = vsel %vm1729, %v1612, -1e+30
        %v1734 = vsel %vm1729, %v1617, -1e+30
        %v1735 = vsel %vm1729, %v1620, -1e+30
        %v1736 = vsel %vm1729, %v1625, -1e+30
        %v1737 = vsel %vm1729, %v1628, -1e+30
        %v1738 = vsel %vm1729, %v1633, -1e+30
        %v1739 = vsel %vm1729, %v1636, -1e+30
        %v1740 = vsel %vm1729, %v1641, -1e+30
        %v1741 = vsel %vm1729, %v1644, -1e+30
        %v1742 = vsel %vm1729, %v1649, -1e+30
        %v1743 = vsel %vm1729, %v1652, -1e+30
        %v1744 = vsel %vm1729, %v1657, -1e+30
        %v1745 = vsel %vm1729, %v1660, -1e+30
        %v1746 = vsel %vm1729, %v1665, -1e+30
        %v1747 = vsel %vm1729, %v1668, -1e+30
        %v1748 = vsel %vm1729, %v1673, -1e+30
        %v1749 = vsel %vm1729, %v1676, -1e+30
        %v1750 = vsel %vm1729, %v1681, -1e+30
        %v1751 = vsel %vm1729, %v1684, -1e+30
        %v1752 = vsel %vm1729, %v1689, -1e+30
        %v1753 = vsel %vm1729, %v1692, -1e+30
        %v1754 = vsel %vm1729, %v1697, -1e+30
        %v1755 = vsel %vm1729, %v1700, -1e+30
        %v1756 = vsel %vm1729, %v1705, -1e+30
        %v1757 = vsel %vm1729, %v1708, -1e+30
        %v1758 = vsel %vm1729, %v1713, -1e+30
        %v1759 = vsel %vm1729, %v1716, -1e+30
        %v1760 = vsel %vm1729, %v1721, -1e+30
        %v1761 = vsel %vm1729, %v1724, -1e+30
        %1762 = vmax.xlane.f32.xlu0 %v1730
        %v1763 = vpop.xlane.xlu0 %1762
        %1764 = vmax.xlane.f32.xlu0 %v1731
        %v1765 = vpop.xlane.xlu0 %1764
        %1766 = vmax.xlane.f32.xlu0 %v1732
        %v1767 = vpop.xlane.xlu0 %1766
        %1768 = vmax.xlane.f32.xlu0 %v1733
        %v1769 = vpop.xlane.xlu0 %1768
        %1770 = vmax.xlane.f32.xlu0 %v1734
        %v1771 = vpop.xlane.xlu0 %1770
        %1772 = vmax.xlane.f32.xlu0 %v1735
        %v1773 = vpop.xlane.xlu0 %1772
        %1774 = vmax.xlane.f32.xlu0 %v1736
        %v1775 = vpop.xlane.xlu0 %1774
        %1776 = vmax.xlane.f32.xlu0 %v1737
        %v1777 = vpop.xlane.xlu0 %1776
        %1778 = vmax.xlane.f32.xlu0 %v1738
        %v1779 = vpop.xlane.xlu0 %1778
        %1780 = vmax.xlane.f32.xlu0 %v1739
        %v1781 = vpop.xlane.xlu0 %1780
        %1782 = vmax.xlane.f32.xlu0 %v1740
        %v1783 = vpop.xlane.xlu0 %1782
        %1784 = vmax.xlane.f32.xlu0 %v1741
        %v1785 = vpop.xlane.xlu0 %1784
        %1786 = vmax.xlane.f32.xlu0 %v1742
        %v1787 = vpop.xlane.xlu0 %1786
        %1788 = vmax.xlane.f32.xlu0 %v1743
        %v1789 = vpop.xlane.xlu0 %1788
        %1790 = vmax.xlane.f32.xlu0 %v1744
        %v1791 = vpop.xlane.xlu0 %1790
        %1792 = vmax.xlane.f32.xlu0 %v1745
        %v1793 = vpop.xlane.xlu0 %1792
        %1794 = vmax.xlane.f32.xlu0 %v1746
        %v1795 = vpop.xlane.xlu0 %1794
        %1796 = vmax.xlane.f32.xlu0 %v1747
        %v1797 = vpop.xlane.xlu0 %1796
        %1798 = vmax.xlane.f32.xlu0 %v1748
        %v1799 = vpop.xlane.xlu0 %1798
        %1800 = vmax.xlane.f32.xlu0 %v1749
        %v1801 = vpop.xlane.xlu0 %1800
        %1802 = vmax.xlane.f32.xlu0 %v1750
        %v1803 = vpop.xlane.xlu0 %1802
        %1804 = vmax.xlane.f32.xlu0 %v1751
        %v1805 = vpop.xlane.xlu0 %1804
        %1806 = vmax.xlane.f32.xlu0 %v1752
        %v1807 = vpop.xlane.xlu0 %1806
        %1808 = vmax.xlane.f32.xlu0 %v1753
        %v1809 = vpop.xlane.xlu0 %1808
        %1810 = vmax.xlane.f32.xlu0 %v1754
        %v1811 = vpop.xlane.xlu0 %1810
        %1812 = vmax.xlane.f32.xlu0 %v1755
        %v1813 = vpop.xlane.xlu0 %1812
        %1814 = vmax.xlane.f32.xlu0 %v1756
        %v1815 = vpop.xlane.xlu0 %1814
        %1816 = vmax.xlane.f32.xlu0 %v1757
        %v1817 = vpop.xlane.xlu0 %1816
        %1818 = vmax.xlane.f32.xlu0 %v1758
        %v1819 = vpop.xlane.xlu0 %1818
        %1820 = vmax.xlane.f32.xlu0 %v1759
        %v1821 = vpop.xlane.xlu0 %1820
        %1822 = vmax.xlane.f32.xlu0 %v1760
        %v1823 = vpop.xlane.xlu0 %1822
        %1824 = vmax.xlane.f32.xlu0 %v1761
        %v1825 = vpop.xlane.xlu0 %1824
        %v1826 = vsub.f32 %v1730, %v1763
        %v1827 = vsub.f32 %v1731, %v1765
        %v1828 = vsub.f32 %v1732, %v1767
        %v1829 = vsub.f32 %v1733, %v1769
        %v1830 = vsub.f32 %v1734, %v1771
        %v1831 = vsub.f32 %v1735, %v1773
        %v1832 = vsub.f32 %v1736, %v1775
        %v1833 = vsub.f32 %v1737, %v1777
        %v1834 = vsub.f32 %v1738, %v1779
        %v1835 = vsub.f32 %v1739, %v1781
        %v1836 = vsub.f32 %v1740, %v1783
        %v1837 = vsub.f32 %v1741, %v1785
        %v1838 = vsub.f32 %v1742, %v1787
        %v1839 = vsub.f32 %v1743, %v1789
        %v1840 = vsub.f32 %v1744, %v1791
        %v1841 = vsub.f32 %v1745, %v1793
        %v1842 = vsub.f32 %v1746, %v1795
        %v1843 = vsub.f32 %v1747, %v1797
        %v1844 = vsub.f32 %v1748, %v1799
        %v1845 = vsub.f32 %v1749, %v1801
        %v1846 = vsub.f32 %v1750, %v1803
        %v1847 = vsub.f32 %v1751, %v1805
        %v1848 = vsub.f32 %v1752, %v1807
        %v1849 = vsub.f32 %v1753, %v1809
        %v1850 = vsub.f32 %v1754, %v1811
        %v1851 = vsub.f32 %v1755, %v1813
        %v1852 = vsub.f32 %v1756, %v1815
        %v1853 = vsub.f32 %v1757, %v1817
        %v1854 = vsub.f32 %v1758, %v1819
        %v1855 = vsub.f32 %v1759, %v1821
        %v1856 = vsub.f32 %v1760, %v1823
        %v1857 = vsub.f32 %v1761, %v1825
        %v1858 = vmul.f32 %v1826, 1.442695
        %v1859 = vpow.pop %v1858
        %v1860 = vmul.f32 %v1827, 1.442695
        %v1861 = vpow.pop %v1860
        %v1862 = vmul.f32 %v1828, 1.442695
        %v1863 = vpow.pop %v1862
        %v1864 = vmul.f32 %v1829, 1.442695
        %v1865 = vpow.pop %v1864
        %v1866 = vmul.f32 %v1830, 1.442695
        %v1867 = vpow.pop %v1866
        %v1868 = vmul.f32 %v1831, 1.442695
        %v1869 = vpow.pop %v1868
        %v1870 = vmul.f32 %v1832, 1.442695
        %v1871 = vpow.pop %v1870
        %v1872 = vmul.f32 %v1833, 1.442695
        %v1873 = vpow.pop %v1872
        %v1874 = vmul.f32 %v1834, 1.442695
        %v1875 = vpow.pop %v1874
        %v1876 = vmul.f32 %v1835, 1.442695
        %v1877 = vpow.pop %v1876
        %v1878 = vmul.f32 %v1836, 1.442695
        %v1879 = vpow.pop %v1878
        %v1880 = vmul.f32 %v1837, 1.442695
        %v1881 = vpow.pop %v1880
        %v1882 = vmul.f32 %v1838, 1.442695
        %v1883 = vpow.pop %v1882
        %v1884 = vmul.f32 %v1839, 1.442695
        %v1885 = vpow.pop %v1884
        %v1886 = vmul.f32 %v1840, 1.442695
        %v1887 = vpow.pop %v1886
        %v1888 = vmul.f32 %v1841, 1.442695
        %v1889 = vpow.pop %v1888
        %v1890 = vmul.f32 %v1842, 1.442695
        %v1891 = vpow.pop %v1890
        %v1892 = vmul.f32 %v1843, 1.442695
        %v1893 = vpow.pop %v1892
        %v1894 = vmul.f32 %v1844, 1.442695
        %v1895 = vpow.pop %v1894
        %v1896 = vmul.f32 %v1845, 1.442695
        %v1897 = vpow.pop %v1896
        %v1898 = vmul.f32 %v1846, 1.442695
        %v1899 = vpow.pop %v1898
        %v1900 = vmul.f32 %v1847, 1.442695
        %v1901 = vpow.pop %v1900
        %v1902 = vmul.f32 %v1848, 1.442695
        %v1903 = vpow.pop %v1902
        %v1904 = vmul.f32 %v1849, 1.442695
        %v1905 = vpow.pop %v1904
        %v1906 = vmul.f32 %v1850, 1.442695
        %v1907 = vpow.pop %v1906
        %v1908 = vmul.f32 %v1851, 1.442695
        %v1909 = vpow.pop %v1908
        %v1910 = vmul.f32 %v1852, 1.442695
        %v1911 = vpow.pop %v1910
        %v1912 = vmul.f32 %v1853, 1.442695
        %v1913 = vpow.pop %v1912
        %v1914 = vmul.f32 %v1854, 1.442695
        %v1915 = vpow.pop %v1914
        %v1916 = vmul.f32 %v1855, 1.442695
        %v1917 = vpow.pop %v1916
        %v1918 = vmul.f32 %v1856, 1.442695
        %v1919 = vpow.pop %v1918
        %v1920 = vmul.f32 %v1857, 1.442695
        %v1921 = vpow.pop %v1920
        %1922 = vadd.xlane.f32.xlu0 %v1859
        %v1923 = vpop.xlane.xlu0 %1922
        %1924 = vadd.xlane.f32.xlu0 %v1861
        %v1925 = vpop.xlane.xlu0 %1924
        %1926 = vadd.xlane.f32.xlu0 %v1863
        %v1927 = vpop.xlane.xlu0 %1926
        %1928 = vadd.xlane.f32.xlu0 %v1865
        %v1929 = vpop.xlane.xlu0 %1928
        %1930 = vadd.xlane.f32.xlu0 %v1867
        %v1931 = vpop.xlane.xlu0 %1930
        %1932 = vadd.xlane.f32.xlu0 %v1869
        %v1933 = vpop.xlane.xlu0 %1932
        %1934 = vadd.xlane.f32.xlu0 %v1871
        %v1935 = vpop.xlane.xlu0 %1934
        %1936 = vadd.xlane.f32.xlu0 %v1873
        %v1937 = vpop.xlane.xlu0 %1936
        %1938 = vadd.xlane.f32.xlu0 %v1875
        %v1939 = vpop.xlane.xlu0 %1938
        %1940 = vadd.xlane.f32.xlu0 %v1877
        %v1941 = vpop.xlane.xlu0 %1940
        %1942 = vadd.xlane.f32.xlu0 %v1879
        %v1943 = vpop.xlane.xlu0 %1942
        %1944 = vadd.xlane.f32.xlu0 %v1881
        %v1945 = vpop.xlane.xlu0 %1944
        %1946 = vadd.xlane.f32.xlu0 %v1883
        %v1947 = vpop.xlane.xlu0 %1946
        %1948 = vadd.xlane.f32.xlu0 %v1885
        %v1949 = vpop.xlane.xlu0 %1948
        %1950 = vadd.xlane.f32.xlu0 %v1887
        %v1951 = vpop.xlane.xlu0 %1950
        %1952 = vadd.xlane.f32.xlu0 %v1889
        %v1953 = vpop.xlane.xlu0 %1952
        %1954 = vadd.xlane.f32.xlu0 %v1891
        %v1955 = vpop.xlane.xlu0 %1954
        %1956 = vadd.xlane.f32.xlu0 %v1893
        %v1957 = vpop.xlane.xlu0 %1956
        %1958 = vadd.xlane.f32.xlu0 %v1895
        %v1959 = vpop.xlane.xlu0 %1958
        %1960 = vadd.xlane.f32.xlu0 %v1897
        %v1961 = vpop.xlane.xlu0 %1960
        %1962 = vadd.xlane.f32.xlu0 %v1899
        %v1963 = vpop.xlane.xlu0 %1962
        %1964 = vadd.xlane.f32.xlu0 %v1901
        %v1965 = vpop.xlane.xlu0 %1964
        %1966 = vadd.xlane.f32.xlu0 %v1903
        %v1967 = vpop.xlane.xlu0 %1966
        %1968 = vadd.xlane.f32.xlu0 %v1905
        %v1969 = vpop.xlane.xlu0 %1968
        %1970 = vadd.xlane.f32.xlu0 %v1907
        %v1971 = vpop.xlane.xlu0 %1970
        %1972 = vadd.xlane.f32.xlu0 %v1909
        %v1973 = vpop.xlane.xlu0 %1972
        %1974 = vadd.xlane.f32.xlu0 %v1911
        %v1975 = vpop.xlane.xlu0 %1974
        %1976 = vadd.xlane.f32.xlu0 %v1913
        %v1977 = vpop.xlane.xlu0 %1976
        %1978 = vadd.xlane.f32.xlu0 %v1915
        %v1979 = vpop.xlane.xlu0 %1978
        %1980 = vadd.xlane.f32.xlu0 %v1917
        %v1981 = vpop.xlane.xlu0 %1980
        %1982 = vadd.xlane.f32.xlu0 %v1919
        %v1983 = vpop.xlane.xlu0 %1982
        %1984 = vadd.xlane.f32.xlu0 %v1921
        %v1985 = vpop.xlane.xlu0 %1984
        %v1986 = vlog2.pop %v1923
        %v1987 = vmul.f32 %v1986, 0.6931472
        %v1988 = vlog2.pop %v1925
        %v1989 = vmul.f32 %v1988, 0.6931472
        %v1990 = vlog2.pop %v1927
        %v1991 = vmul.f32 %v1990, 0.6931472
        %v1992 = vlog2.pop %v1929
        %v1993 = vmul.f32 %v1992, 0.6931472
        %v1994 = vlog2.pop %v1931
        %v1995 = vmul.f32 %v1994, 0.6931472
        %v1996 = vlog2.pop %v1933
        %v1997 = vmul.f32 %v1996, 0.6931472
        %v1998 = vlog2.pop %v1935
        %v1999 = vmul.f32 %v1998, 0.6931472
        %v2000 = vlog2.pop %v1937
        %v2001 = vmul.f32 %v2000, 0.6931472
        %v2002 = vlog2.pop %v1939
        %v2003 = vmul.f32 %v2002, 0.6931472
        %v2004 = vlog2.pop %v1941
        %v2005 = vmul.f32 %v2004, 0.6931472
        %v2006 = vlog2.pop %v1943
        %v2007 = vmul.f32 %v2006, 0.6931472
        %v2008 = vlog2.pop %v1945
        %v2009 = vmul.f32 %v2008, 0.6931472
        %v2010 = vlog2.pop %v1947
        %v2011 = vmul.f32 %v2010, 0.6931472
        %v2012 = vlog2.pop %v1949
        %v2013 = vmul.f32 %v2012, 0.6931472
        %v2014 = vlog2.pop %v1951
        %v2015 = vmul.f32 %v2014, 0.6931472
        %v2016 = vlog2.pop %v1953
        %v2017 = vmul.f32 %v2016, 0.6931472
        %v2018 = vlog2.pop %v1955
        %v2019 = vmul.f32 %v2018, 0.6931472
        %v2020 = vlog2.pop %v1957
        %v2021 = vmul.f32 %v2020, 0.6931472
        %v2022 = vlog2.pop %v1959
        %v2023 = vmul.f32 %v2022, 0.6931472
        %v2024 = vlog2.pop %v1961
        %v2025 = vmul.f32 %v2024, 0.6931472
        %v2026 = vlog2.pop %v1963
        %v2027 = vmul.f32 %v2026, 0.6931472
        %v2028 = vlog2.pop %v1965
        %v2029 = vmul.f32 %v2028, 0.6931472
        %v2030 = vlog2.pop %v1967
        %v2031 = vmul.f32 %v2030, 0.6931472
        %v2032 = vlog2.pop %v1969
        %v2033 = vmul.f32 %v2032, 0.6931472
        %v2034 = vlog2.pop %v1971
        %v2035 = vmul.f32 %v2034, 0.6931472
        %v2036 = vlog2.pop %v1973
        %v2037 = vmul.f32 %v2036, 0.6931472
        %v2038 = vlog2.pop %v1975
        %v2039 = vmul.f32 %v2038, 0.6931472
        %v2040 = vlog2.pop %v1977
        %v2041 = vmul.f32 %v2040, 0.6931472
        %v2042 = vlog2.pop %v1979
        %v2043 = vmul.f32 %v2042, 0.6931472
        %v2044 = vlog2.pop %v1981
        %v2045 = vmul.f32 %v2044, 0.6931472
        %v2046 = vlog2.pop %v1983
        %v2047 = vmul.f32 %v2046, 0.6931472
        %v2048 = vlog2.pop %v1985
        %v2049 = vmul.f32 %v2048, 0.6931472
        %v2050 = vsub.f32 %v1826, %v1987
        %v2051 = vsub.f32 %v1827, %v1989
        %v2052 = vsub.f32 %v1828, %v1991
        %v2053 = vsub.f32 %v1829, %v1993
        %v2054 = vsub.f32 %v1830, %v1995
        %v2055 = vsub.f32 %v1831, %v1997
        %v2056 = vsub.f32 %v1832, %v1999
        %v2057 = vsub.f32 %v1833, %v2001
        %v2058 = vsub.f32 %v1834, %v2003
        %v2059 = vsub.f32 %v1835, %v2005
        %v2060 = vsub.f32 %v1836, %v2007
        %v2061 = vsub.f32 %v1837, %v2009
        %v2062 = vsub.f32 %v1838, %v2011
        %v2063 = vsub.f32 %v1839, %v2013
        %v2064 = vsub.f32 %v1840, %v2015
        %v2065 = vsub.f32 %v1841, %v2017
        %v2066 = vsub.f32 %v1842, %v2019
        %v2067 = vsub.f32 %v1843, %v2021
        %v2068 = vsub.f32 %v1844, %v2023
        %v2069 = vsub.f32 %v1845, %v2025
        %v2070 = vsub.f32 %v1846, %v2027
        %v2071 = vsub.f32 %v1847, %v2029
        %v2072 = vsub.f32 %v1848, %v2031
        %v2073 = vsub.f32 %v1849, %v2033
        %v2074 = vsub.f32 %v1850, %v2035
        %v2075 = vsub.f32 %v1851, %v2037
        %v2076 = vsub.f32 %v1852, %v2039
        %v2077 = vsub.f32 %v1853, %v2041
        %v2078 = vsub.f32 %v1854, %v2043
        %v2079 = vsub.f32 %v1855, %v2045
        %v2080 = vsub.f32 %v1856, %v2047
        %v2081 = vsub.f32 %v1857, %v2049
        %2082 = vst [vmem:[%s219] sm:$0xff] %v2050
        %2083 = vst [vmem:[%s219 + $0x8] sm:$0xff] %v2051
        %2084 = vst [vmem:[%s219 + $0x10] sm:$0xff] %v2052
        %2085 = vst [vmem:[%s219 + $0x18] sm:$0xff] %v2053
        %2086 = vst [vmem:[%s219 + $0x20] sm:$0xff] %v2054
        %2087 = vst [vmem:[%s219 + $0x28] sm:$0xff] %v2055
        %2088 = vst [vmem:[%s219 + $0x30] sm:$0xff] %v2056
        %2089 = vst [vmem:[%s219 + $0x38] sm:$0xff] %v2057
        %2090 = vst [vmem:[%s219 + $0x40] sm:$0xff] %v2058
        %2091 = vst [vmem:[%s219 + $0x48] sm:$0xff] %v2059
        %2092 = vst [vmem:[%s219 + $0x50] sm:$0xff] %v2060
        %2093 = vst [vmem:[%s219 + $0x58] sm:$0xff] %v2061
        %2094 = vst [vmem:[%s219 + $0x60] sm:$0xff] %v2062
        %2095 = vst [vmem:[%s219 + $0x68] sm:$0xff] %v2063
        %2096 = vst [vmem:[%s219 + $0x70] sm:$0xff] %v2064
        %2097 = vst [vmem:[%s219 + $0x78] sm:$0xff] %v2065
        %2098 = vst [vmem:[%s219 + $0x80] sm:$0xff] %v2066
        %2099 = vst [vmem:[%s219 + $0x88] sm:$0xff] %v2067
        %2100 = vst [vmem:[%s219 + $0x90] sm:$0xff] %v2068
        %2101 = vst [vmem:[%s219 + $0x98] sm:$0xff] %v2069
        %2102 = vst [vmem:[%s219 + $0xa0] sm:$0xff] %v2070
        %2103 = vst [vmem:[%s219 + $0xa8] sm:$0xff] %v2071
        %2104 = vst [vmem:[%s219 + $0xb0] sm:$0xff] %v2072
        %2105 = vst [vmem:[%s219 + $0xb8] sm:$0xff] %v2073
        %2106 = vst [vmem:[%s219 + $0xc0] sm:$0xff] %v2074
        %2107 = vst [vmem:[%s219 + $0xc8] sm:$0xff] %v2075
        %2108 = vst [vmem:[%s219 + $0xd0] sm:$0xff] %v2076
        %2109 = vst [vmem:[%s219 + $0xd8] sm:$0xff] %v2077
        %2110 = vst [vmem:[%s219 + $0xe0] sm:$0xff] %v2078
        %2111 = vst [vmem:[%s219 + $0xe8] sm:$0xff] %v2079
        %2112 = vst [vmem:[%s219 + $0xf0] sm:$0xff] %v2080
        %2113 = vst [vmem:[%s219 + $0xf8] sm:$0xff] %v2081
      $region83: #{gcn_forward.1} parent=35 // pred_fallthru
        _
      %s2114 = smul.u32 %s21, %s20
      %s2115 = smul.u32 32, %s2114
      %p2116 = scmp.lt.s32.totalorder %s2115, 31
      %s2117 = scalar_select %p2116, %s2115, 31
      %s2118 = smul.addr %s2117, 8
      %s2119 = scalar_lea.vmem %s5, %s2118
      // Predicated region
      $region84: #{gcn_forward.1} parent=35 // pred_check
        %p2120 = pneg %p137
      $region85: #{gcn_forward.1} parent=35 // pred_check_branch
        %2122 = sbr.rel (%p2120) target = $region87
      $region86: #{gcn_forward.1} parent=35 // pred_region
        %s2123 = smul.u32 %s21, %s20
        %s2124 = smul.u32 32, %s2123
      $region87: #{gcn_forward.1} parent=35 // pred_fallthru
        _
    $region36: #{gcn_forward.1} parent=5 // pred_fallthru
      _
    %p2125 = scmp.le.s32.totalorder 2, %s11
    // Predicated region
    $region88: #{gcn_forward.1} parent=5 // pred_check
      %p2126 = pneg %p2125
    $region89: #{gcn_forward.1} parent=5 // pred_check_branch
      %2128 = sbr.rel (%p2126) target = $region91
    $region90: #{gcn_forward.1} parent=5 // pred_region
      %s2129 = ssub.s32 %s11, 2
      // Predicated region
      $region92: #{gcn_forward.1} parent=90 // pred_check
        %p2130 = pneg %p143
      $region93: #{gcn_forward.1} parent=90 // pred_check_branch
        %2132 = sbr.rel (%p2130) target = $region95
      $region94: #{gcn_forward.1} parent=90 // pred_region
        %s2133 = smul.u32 %s23, %s22
        %s2134 = smul.u32 32, %s2133
        %p2135 = scmp.lt.s32.totalorder %s2134, 31
        %s2136 = scalar_select %p2135, %s2134, 31
        %s2137 = smul.addr %s2136, 8
        %s2138 = scalar_lea.vmem %s5, %s2137
      $region95: #{gcn_forward.1} parent=90 // pred_fallthru
        _
    $region91: #{gcn_forward.1} parent=5 // pred_fallthru
      _
  $region6: #{gcn_forward.1} parent=0 // loop_footer
    %s15 = sadd.s32 1, %s11
  $region7: #{gcn_forward.1} parent=0 // loop_footer_branch
    %10 = sbr.rel target = $region3
  $region8: #{gcn_forward.1} parent=0 // loop_exit
    _

</llo_original>
